<compile_context>
chip_gen: v7x
topology: tpu7x:2x2x1
jax: 0.10.0
libtpu: 0.0.40
codegen_flags: <defaults>
</compile_context>

<pallas_src>
import functools

import numpy as np
import jax
import jax.numpy as jnp
from jax.experimental import pallas as pl
from jax.experimental.pallas import tpu as pltpu


# ----------------------------------------------------------------------------
# Kernel
# ----------------------------------------------------------------------------
def rcab_kernel(x_ref, m1_ref, b1_ref, m2_ref, b2_ref,
                wdp_ref, bdp_ref, wup_ref, bup_ref, o_ref, *,
                num_feat, height, res_scale):
    # x_ref : (nb*H, W*C) f32   lane-packed NHWC rows for nb images
    # m1/m2 : (3*W*C, W*C)      fused band conv weights (dy taps stacked on K;
    #                           dx taps + SAME W-padding folded in)
    # b1/b2 : (1, W*C)          conv biases, tiled to the packed layout
    # wdp   : (Cmid, W*C)       squeeze weight (transposed, tiled, pre-scaled)
    # bdp   : (Cmid, 1)         squeeze bias
    # wup   : (Cmid, W*C)       excite weight, tiled to the packed layout
    # bup   : (1, W*C)          excite bias, tiled to the packed layout
    # o_ref : (nb*H, W*C)
    M, WC = x_ref.shape
    H = height
    C = num_feat
    W = WC // C
    nb = M // H

    x = x_ref[...]                                           # (M, WC) f32

    # Within-image row id; keeps the dy row shifts from leaking across the nb
    # images stacked along M.
    h_id = jax.lax.broadcasted_iota(jnp.int32, (M, WC), 0) % H
    not_top = h_id != 0          # rows with a valid same-image row above
    not_bot = h_id != H - 1      # rows with a valid same-image row below

    def conv3x3(inp, band_ref, bias_ref):
        # 3x3 SAME conv in packed layout as ONE MXU matmul: the dy row taps are
        # concatenated along K and matched by the (3*WC, WC) band matrix.
        a = inp.astype(band_ref.dtype)                       # bf16 (or f32) MXU operand
        zrow = jnp.zeros((1, WC), a.dtype)
        up = jnp.concatenate([zrow, a[:-1, :]], axis=0)      # row r reads inp[r-1]
        dn = jnp.concatenate([a[1:, :], zrow], axis=0)       # row r reads inp[r+1]
        up = jnp.where(not_top, up, jnp.zeros_like(up))      # zero at image edges
        dn = jnp.where(not_bot, dn, jnp.zeros_like(dn))
        lhs = jnp.concatenate([up, a, dn], axis=1)           # (M, 3*WC)
        acc = jnp.dot(lhs, band_ref[...], preferred_element_type=jnp.float32)
        return acc + bias_ref[...]                           # f32 (M, WC)

    h1 = jnp.maximum(conv3x3(x, m1_ref, b1_ref), 0.0)        # conv1 + ReLU
    h2 = conv3x3(h1, m2_ref, b2_ref)                         # conv2

    # ---- channel attention + residual, per image (VPU/XLU/EUP only) ----
    for n in range(nb):                                      # nb is small & static
        rows = slice(n * H, (n + 1) * H)
        h2n = h2[rows, :]                                    # (H, WC)

        # Spatial pooling: sublane reduce over H, then lane rolls by multiples
        # of C accumulate over the W blocks; lane w*C + c then holds the full
        # spatial sum of channel c (replicated across blocks).
        s = jnp.sum(h2n, axis=0, keepdims=True)              # (1, WC)
        if (W & (W - 1)) == 0:                               # power-of-two W
            shift = C
            while shift < WC:
                s = s + pltpu.roll(s, shift=shift, axis=1)
                shift *= 2
        else:                                                # O(log W) doubling
            win, win_len = s, 1
            acc, done, rem = None, 0, W
            while rem:
                if rem & 1:
                    piece = pltpu.roll(win, shift=done * C, axis=1) if done else win
                    acc = piece if acc is None else acc + piece
                    done += win_len
                rem >>= 1
                if rem:
                    win = win + pltpu.roll(win, shift=win_len * C, axis=1)
                    win_len *= 2
            s = acc

        # Squeeze (1x1 conv C->Cmid): broadcast-mul + lane reduce. The 1/(H*W)
        # pooling mean and the xW replication over-count are folded into wdp.
        mid = jnp.sum(s * wdp_ref[...], axis=1, keepdims=True) + bdp_ref[...]   # (Cmid, 1)
        mid = jnp.maximum(mid, 0.0)
        # Excite (1x1 conv Cmid->C): broadcast-mul + sublane reduce; wup/bup are
        # pre-tiled so att lands directly in the packed (1, W*C) layout.
        att = jax.nn.sigmoid(
            jnp.sum(mid * wup_ref[...], axis=0, keepdims=True) + bup_ref[...])  # (1, WC)

        res = h2n * att
        if res_scale != 1.0:                                 # compile-time constant
            res = res * res_scale
        o_ref[rows, :] = (res + x[rows, :]).astype(o_ref.dtype)


# ----------------------------------------------------------------------------
# Parameter packing (done once, outside the hot path)
# ----------------------------------------------------------------------------
def _band_conv_matrix(w_hwio, width):
    """(3, 3, C, C) HWIO weight -> (3*W*C, W*C) fused block-Toeplitz matrix.

    band[dy*W*C + (w+dx-1)*C + ci, w*C + co] = w[dy, dx, ci, co]; out-of-range
    columns stay zero, which implements SAME zero-padding along W. The dy
    blocks are stacked along K to match the [up | mid | dn] LHS concat.
    """
    w = np.asarray(w_hwio, dtype=np.float32)
    C = w.shape[2]
    WC = width * C
    m = np.zeros((3, WC, WC), np.float32)
    for dy in range(3):
        for dx in range(3):
            for ww in range(width):
                src = ww + dx - 1
                if 0 <= src < width:
                    m[dy, src * C:(src + 1) * C, ww * C:(ww + 1) * C] = w[dy, dx]
    return jnp.asarray(m.reshape(3 * WC, WC))


def pack_rcab_params(params, height, width, mxu_dtype=jnp.bfloat16):
    """Repack RCAB params (HWIO convs + 1x1 attention) into the packed layout."""
    w1, b1, w2, b2, wd, bd, wu, bu = params
    C = w1.shape[2]
    Cmid = wd.shape[1]
    m1 = _band_conv_matrix(w1, width).astype(mxu_dtype)
    m2 = _band_conv_matrix(w2, width).astype(mxu_dtype)
    b1p = jnp.tile(jnp.reshape(b1, (1, C)).astype(jnp.float32), (1, width))
    b2p = jnp.tile(jnp.reshape(b2, (1, C)).astype(jnp.float32), (1, width))
    # Squeeze weight transposed + tiled to (Cmid, W*C); fold in the 1/(H*W)
    # pooling mean and the 1/W over-count from the block-replicated sums.
    wdp = jnp.tile(jnp.transpose(wd).astype(jnp.float32), (1, width)) / float(
        width * height * width)
    bdp = jnp.reshape(bd, (Cmid, 1)).astype(jnp.float32)
    wup = jnp.tile(wu.astype(jnp.float32), (1, width))                 # (Cmid, W*C)
    bup = jnp.tile(jnp.reshape(bu, (1, C)).astype(jnp.float32), (1, width))
    return dict(num_feat=C, height=int(height), width=int(width),
                m1=m1, b1=b1p, m2=m2, b2=b2p,
                wdp=wdp, bdp=bdp, wup=wup, bup=bup)


# ----------------------------------------------------------------------------
# Forward wrappers
# ----------------------------------------------------------------------------
def _default_batch_block(n):
    """Largest divisor of n that is <= 4: grows the matmul M while leaving
    >= 2 'parallel' grid steps for v7x's two TensorCores once N >= 8."""
    for d in range(min(n, 4), 0, -1):
        if n % d == 0:
            return d
    return 1


@functools.partial(jax.jit,
                   static_argnames=("num_feat", "height", "res_scale", "batch_block"))
def _rcab_packed_call(x2d, m1, b1, m2, b2, wdp, bdp, wup, bup, *,
                      num_feat, height, res_scale, batch_block):
    NH, WC = x2d.shape
    rows = batch_block * height
    K3 = m1.shape[0]
    Cmid = wdp.shape[0]
    kernel = functools.partial(rcab_kernel, num_feat=num_feat, height=height,
                               res_scale=res_scale)
    # TODO(synk): at production sizes mark the grid-invariant weight specs
    #   pipeline_mode=pl.Buffered(1) and set vmem_limit_bytes explicitly so the
    #   band matrices are not double-buffered inside v7x's 64 MiB VMEM.
    return pl.pallas_call(
        kernel,
        out_shape=jax.ShapeDtypeStruct((NH, WC), x2d.dtype),
        grid_spec=pltpu.PrefetchScalarGridSpec(
            num_scalar_prefetch=0,
            grid=(NH // rows,),
            in_specs=[
                pl.BlockSpec((rows, WC), lambda b: (b, 0)),          # x
                pl.BlockSpec((K3, WC), lambda b: (0, 0)),            # m1
                pl.BlockSpec((1, WC), lambda b: (0, 0)),             # b1
                pl.BlockSpec((K3, WC), lambda b: (0, 0)),            # m2
                pl.BlockSpec((1, WC), lambda b: (0, 0)),             # b2
                pl.BlockSpec((Cmid, WC), lambda b: (0, 0)),          # wdp
                pl.BlockSpec((Cmid, 1), lambda b: (0, 0)),           # bdp
                pl.BlockSpec((Cmid, WC), lambda b: (0, 0)),          # wup
                pl.BlockSpec((1, WC), lambda b: (0, 0)),             # bup
            ],
            out_specs=pl.BlockSpec((rows, WC), lambda b: (b, 0)),
        ),
        compiler_params=pltpu.CompilerParams(
            dimension_semantics=("parallel",)),
    )(x2d, m1, b1, m2, b2, wdp, bdp, wup, bup)


def rcab_forward_packed(x_packed, packed, res_scale=1.0, batch_block=None):
    """RCAB on lane-packed activations: x_packed is (N, H, W*C). Use this to
    chain RCABs without per-block NCHW<->NHWC transposes."""
    N, H, WC = x_packed.shape
    C = packed["num_feat"]
    assert H == packed["height"] and WC == packed["width"] * C, (
        "packed params were built for H=%d, W=%d, C=%d but got x of shape %s"
        % (packed["height"], packed["width"], C, str(x_packed.shape)))
    assert H % 8 == 0 and WC % 128 == 0, "need H % 8 == 0 and W*C % 128 == 0"
    if batch_block is None:
        batch_block = _default_batch_block(N)
    assert N % batch_block == 0, "batch_block must divide N"
    x2d = x_packed.reshape(N * H, WC)
    out = _rcab_packed_call(
        x2d, packed["m1"], packed["b1"], packed["m2"], packed["b2"],
        packed["wdp"], packed["bdp"], packed["wup"], packed["bup"],
        num_feat=C, height=H, res_scale=float(res_scale),
        batch_block=int(batch_block))
    return out.reshape(N, H, WC)


def rcab_forward(x_nchw, packed, res_scale=1.0, batch_block=None):
    """RCAB forward, NCHW float32 in/out (PyTorch convention)."""
    N, C, H, W = x_nchw.shape
    x = jnp.transpose(x_nchw, (0, 2, 3, 1)).reshape(N, H, W * C)
    out = rcab_forward_packed(x, packed, res_scale=res_scale,
                              batch_block=batch_block)
    return jnp.transpose(out.reshape(N, H, W, C), (0, 3, 1, 2))


# ----------------------------------------------------------------------------
# Pure-JAX reference (XLA convs) for correctness checking
# ----------------------------------------------------------------------------
def rcab_reference(x_nchw, params, res_scale=1.0):
    w1, b1, w2, b2, wd, bd, wu, bu = params
    x = jnp.transpose(x_nchw, (0, 2, 3, 1))

    def conv3(inp, w, b):
        y = jax.lax.conv_general_dilated(
            inp, w, window_strides=(1, 1), padding='SAME',
            dimension_numbers=('NHWC', 'HWIO', 'NHWC'))
        return y + b.reshape(1, 1, 1, -1)

    h1 = jax.nn.relu(conv3(x, w1, b1))
    h2 = conv3(h1, w2, b2)
    pooled = jnp.mean(h2, axis=(1, 2))                # (N, C)
    mid = jax.nn.relu(pooled @ wd + bd)
    att = jax.nn.sigmoid(mid @ wu + bu)
    res = h2 * att[:, None, None, :]
    out = res * res_scale + x
    return jnp.transpose(out, (0, 3, 1, 2))


# ----------------------------------------------------------------------------
# Test
# ----------------------------------------------------------------------------
if __name__ == "__main__":
    # RCAN-consistent small shapes: num_feat=16, squeeze_factor=4, 16x16 images.
    N, C, H, W = 2, 16, 16, 16
    Cmid = C // 4
    res_scale = 1.0

    key = jax.random.PRNGKey(0)
    ks = jax.random.split(key, 9)
    w1 = jax.random.normal(ks[0], (3, 3, C, C), jnp.float32) * 0.05   # HWIO
    b1 = jax.random.normal(ks[1], (1, C), jnp.float32) * 0.01
    w2 = jax.random.normal(ks[2], (3, 3, C, C), jnp.float32) * 0.05
    b2 = jax.random.normal(ks[3], (1, C), jnp.float32) * 0.01
    wd = jax.random.normal(ks[4], (C, Cmid), jnp.float32) * 0.1       # 1x1 squeeze
    bd = jax.random.normal(ks[5], (1, Cmid), jnp.float32) * 0.01
    wu = jax.random.normal(ks[6], (Cmid, C), jnp.float32) * 0.1       # 1x1 excite
    bu = jax.random.normal(ks[7], (1, C), jnp.float32) * 0.01
    params = (w1, b1, w2, b2, wd, bd, wu, bu)

    x = jax.random.normal(ks[8], (N, C, H, W), jnp.float32)

    ref = jax.block_until_ready(rcab_reference(x, params, res_scale=res_scale))

    # f32 MXU path, whole batch per grid step (M = N*H): tight tolerance,
    # validates the fused dy-tap band matmul + attention structure.
    packed_f32 = pack_rcab_params(params, height=H, width=W, mxu_dtype=jnp.float32)
    out_f32 = jax.block_until_ready(rcab_forward(x, packed_f32, res_scale=res_scale))
    assert out_f32.shape == (N, C, H, W)
    err32 = float(jnp.max(jnp.abs(out_f32 - ref)))
    assert jnp.allclose(out_f32, ref, atol=2e-3, rtol=2e-3), \
        f"f32 path max abs err {err32}"

    # f32 path again with batch_block=1 (grid=(2,), 'parallel'): checks that
    # the dy-shift boundary masks keep images independent across grid layouts.
    out_f32_g2 = jax.block_until_ready(
        rcab_forward(x, packed_f32, res_scale=res_scale, batch_block=1))
    err32b = float(jnp.max(jnp.abs(out_f32_g2 - ref)))
    assert jnp.allclose(out_f32_g2, ref, atol=2e-3, rtol=2e-3), \
        f"f32 batch_block=1 path max abs err {err32b}"

    # bf16 MXU path (default: 2x MXU rate + half the weight DMA on v6e/v7x).
    packed_bf16 = pack_rcab_params(params, height=H, width=W, mxu_dtype=jnp.bfloat16)
    out_bf16 = jax.block_until_ready(rcab_forward(x, packed_bf16, res_scale=res_scale))
    err16 = float(jnp.max(jnp.abs(out_bf16 - ref)))
    assert jnp.allclose(out_bf16, ref, atol=3e-2, rtol=3e-2), \
        f"bf16 path max abs err {err16}"

    print("KERNEL_OK")
</pallas_src>

<mosaic_0001>
module attributes {stable_mosaic.version = 11 : i64} {
  func.func @rcab_kernel(%arg0: i32, %arg1: memref<32x256xf32, #tpu.memory_space<vmem>>, %arg2: memref<768x256xf32, #tpu.memory_space<vmem>>, %arg3: memref<1x256xf32, #tpu.memory_space<vmem>>, %arg4: memref<768x256xf32, #tpu.memory_space<vmem>>, %arg5: memref<1x256xf32, #tpu.memory_space<vmem>>, %arg6: memref<4x256xf32, #tpu.memory_space<vmem>>, %arg7: memref<4x1xf32, #tpu.memory_space<vmem>>, %arg8: memref<4x256xf32, #tpu.memory_space<vmem>>, %arg9: memref<1x256xf32, #tpu.memory_space<vmem>>, %arg10: memref<32x256xf32, #tpu.memory_space<vmem>>) attributes {dimension_semantics = [#tpu.dimension_semantics<parallel>], iteration_bounds = array<i64: 1>, scalar_prefetch = 0 : i64, scratch_operands = 0 : i64, tpu.core_type = #tpu.core_type<tc>, window_params = [{transform_indices = @transform_0, window_bounds = array<i64: 32, 256>}, {pipeline_mode = #tpu.pipeline_mode<synchronous>, transform_indices = @transform_1, window_bounds = array<i64: 768, 256>}, {pipeline_mode = #tpu.pipeline_mode<synchronous>, transform_indices = @transform_2, window_bounds = array<i64: 1, 256>}, {pipeline_mode = #tpu.pipeline_mode<synchronous>, transform_indices = @transform_3, window_bounds = array<i64: 768, 256>}, {pipeline_mode = #tpu.pipeline_mode<synchronous>, transform_indices = @transform_4, window_bounds = array<i64: 1, 256>}, {pipeline_mode = #tpu.pipeline_mode<synchronous>, transform_indices = @transform_5, window_bounds = array<i64: 4, 256>}, {pipeline_mode = #tpu.pipeline_mode<synchronous>, transform_indices = @transform_6, window_bounds = array<i64: 4, 1>}, {pipeline_mode = #tpu.pipeline_mode<synchronous>, transform_indices = @transform_7, window_bounds = array<i64: 4, 256>}, {pipeline_mode = #tpu.pipeline_mode<synchronous>, transform_indices = @transform_8, window_bounds = array<i64: 1, 256>}, {transform_indices = @transform_9, window_bounds = array<i64: 32, 256>}]} {
    %c0 = arith.constant 0 : index
    %c0_0 = arith.constant 0 : index
    %0 = vector.load %arg1[%c0, %c0_0] : memref<32x256xf32, #tpu.memory_space<vmem>>, vector<32x256xf32>
    %1 = tpu.iota {dimensions = array<i32: 0>} : vector<32x256xi32>
    %c16_i32 = arith.constant 16 : i32
    %c0_i32 = arith.constant 0 : i32
    %2 = arith.cmpi eq, %c16_i32, %c0_i32 : i32
    %c1_i32 = arith.constant 1 : i32
    %3 = arith.select %2, %c1_i32, %c16_i32 : i32
    %4 = vector.broadcast %3 : i32 to vector<32x256xi32>
    %5 = arith.remsi %1, %4 : vector<32x256xi32>
    %c0_i32_1 = arith.constant 0 : i32
    %6 = vector.broadcast %c0_i32_1 : i32 to vector<32x256xi32>
    %7 = arith.cmpi ne, %5, %6 : vector<32x256xi32>
    %c0_i32_2 = arith.constant 0 : i32
    %8 = vector.broadcast %c0_i32_2 : i32 to vector<32x256xi32>
    %9 = arith.cmpi slt, %5, %8 : vector<32x256xi32>
    %c0_i32_3 = arith.constant 0 : i32
    %10 = arith.cmpi slt, %3, %c0_i32_3 : i32
    %11 = vector.broadcast %10 : i1 to vector<32x256xi1>
    %12 = vector.broadcast %11 : vector<32x256xi1> to vector<32x256xi1>
    %13 = arith.xori %9, %12 : vector<32x256xi1>
    %14 = arith.andi %13, %7 : vector<32x256xi1>
    %15 = vector.broadcast %3 : i32 to vector<32x256xi32>
    %16 = arith.addi %5, %15 : vector<32x256xi32>
    %17 = arith.select %14, %16, %5 : vector<32x256xi1>, vector<32x256xi32>
    %c0_i32_4 = arith.constant 0 : i32
    %18 = vector.broadcast %c0_i32_4 : i32 to vector<32x256xi32>
    %19 = arith.cmpi ne, %17, %18 : vector<32x256xi32>
    %c15_i32 = arith.constant 15 : i32
    %20 = vector.broadcast %c15_i32 : i32 to vector<32x256xi32>
    %21 = arith.cmpi ne, %17, %20 : vector<32x256xi32>
    %cst = arith.constant 0.000000e+00 : f32
    %22 = vector.broadcast %cst : f32 to vector<1x256xf32>
    %23 = vector.extract_strided_slice %0 {offsets = [0, 0], sizes = [31, 256], strides = [1, 1]} : vector<32x256xf32> to vector<31x256xf32>
    %24 = tpu.concatenate %22, %23 in 0 : vector<1x256xf32>, vector<31x256xf32> -> vector<32x256xf32>
    %25 = vector.extract_strided_slice %0 {offsets = [1, 0], sizes = [31, 256], strides = [1, 1]} : vector<32x256xf32> to vector<31x256xf32>
    %26 = tpu.concatenate %25, %22 in 0 : vector<31x256xf32>, vector<1x256xf32> -> vector<32x256xf32>
    %cst_5 = arith.constant 0.000000e+00 : f32
    %27 = vector.broadcast %cst_5 : f32 to vector<32x256xf32>
    %28 = arith.select %19, %24, %27 : vector<32x256xi1>, vector<32x256xf32>
    %cst_6 = arith.constant 0.000000e+00 : f32
    %29 = vector.broadcast %cst_6 : f32 to vector<32x256xf32>
    %30 = arith.select %21, %26, %29 : vector<32x256xi1>, vector<32x256xf32>
    %31 = tpu.concatenate %28, %0, %30 in 1 : vector<32x256xf32>, vector<32x256xf32>, vector<32x256xf32> -> vector<32x768xf32>
    %c0_7 = arith.constant 0 : index
    %c0_8 = arith.constant 0 : index
    %32 = vector.load %arg2[%c0_7, %c0_8] : memref<768x256xf32, #tpu.memory_space<vmem>>, vector<768x256xf32>
    %cst_9 = arith.constant dense<0.000000e+00> : vector<32x256xf32>
    %33 = tpu.matmul %31, %32, %cst_9 {dimension_numbers = #tpu.dot_dimension_numbers<[1], [0], [0], [1], [0, 0, 1, 1], [], []>} : vector<32x768xf32>, vector<768x256xf32>, vector<32x256xf32> -> vector<32x256xf32>
    %c0_10 = arith.constant 0 : index
    %c0_11 = arith.constant 0 : index
    %34 = vector.load %arg3[%c0_10, %c0_11] : memref<1x256xf32, #tpu.memory_space<vmem>>, vector<1x256xf32>
    %35 = vector.broadcast %34 : vector<1x256xf32> to vector<32x256xf32>
    %36 = arith.addf %33, %35 : vector<32x256xf32>
    %cst_12 = arith.constant 0.000000e+00 : f32
    %37 = vector.broadcast %cst_12 : f32 to vector<32x256xf32>
    %38 = arith.maximumf %36, %37 : vector<32x256xf32>
    %cst_13 = arith.constant 0.000000e+00 : f32
    %39 = vector.broadcast %cst_13 : f32 to vector<1x256xf32>
    %40 = vector.extract_strided_slice %38 {offsets = [0, 0], sizes = [31, 256], strides = [1, 1]} : vector<32x256xf32> to vector<31x256xf32>
    %41 = tpu.concatenate %39, %40 in 0 : vector<1x256xf32>, vector<31x256xf32> -> vector<32x256xf32>
    %42 = vector.extract_strided_slice %38 {offsets = [1, 0], sizes = [31, 256], strides = [1, 1]} : vector<32x256xf32> to vector<31x256xf32>
    %43 = tpu.concatenate %42, %39 in 0 : vector<31x256xf32>, vector<1x256xf32> -> vector<32x256xf32>
    %cst_14 = arith.constant 0.000000e+00 : f32
    %44 = vector.broadcast %cst_14 : f32 to vector<32x256xf32>
    %45 = arith.select %19, %41, %44 : vector<32x256xi1>, vector<32x256xf32>
    %cst_15 = arith.constant 0.000000e+00 : f32
    %46 = vector.broadcast %cst_15 : f32 to vector<32x256xf32>
    %47 = arith.select %21, %43, %46 : vector<32x256xi1>, vector<32x256xf32>
    %48 = tpu.concatenate %45, %38, %47 in 1 : vector<32x256xf32>, vector<32x256xf32>, vector<32x256xf32> -> vector<32x768xf32>
    %c0_16 = arith.constant 0 : index
    %c0_17 = arith.constant 0 : index
    %49 = vector.load %arg4[%c0_16, %c0_17] : memref<768x256xf32, #tpu.memory_space<vmem>>, vector<768x256xf32>
    %cst_18 = arith.constant dense<0.000000e+00> : vector<32x256xf32>
    %50 = tpu.matmul %48, %49, %cst_18 {dimension_numbers = #tpu.dot_dimension_numbers<[1], [0], [0], [1], [0, 0, 1, 1], [], []>} : vector<32x768xf32>, vector<768x256xf32>, vector<32x256xf32> -> vector<32x256xf32>
    %c0_19 = arith.constant 0 : index
    %c0_20 = arith.constant 0 : index
    %51 = vector.load %arg5[%c0_19, %c0_20] : memref<1x256xf32, #tpu.memory_space<vmem>>, vector<1x256xf32>
    %52 = vector.broadcast %51 : vector<1x256xf32> to vector<32x256xf32>
    %53 = arith.addf %50, %52 : vector<32x256xf32>
    %54 = vector.extract_strided_slice %53 {offsets = [0, 0], sizes = [16, 256], strides = [1, 1]} : vector<32x256xf32> to vector<16x256xf32>
    %cst_21 = arith.constant dense<0.000000e+00> : vector<256xf32>
    %55 = vector.multi_reduction <add>, %54, %cst_21 [0] : vector<16x256xf32> to vector<256xf32>
    %56 = vector.shape_cast %55 : vector<256xf32> to vector<1x256xf32>
    %c16_i32_22 = arith.constant 16 : i32
    %57 = tpu.dynamic_rotate %56 by %c16_i32_22 dim 1 : vector<1x256xf32>, i32 -> vector<1x256xf32>
    %58 = arith.addf %56, %57 : vector<1x256xf32>
    %c32_i32 = arith.constant 32 : i32
    %59 = tpu.dynamic_rotate %58 by %c32_i32 dim 1 : vector<1x256xf32>, i32 -> vector<1x256xf32>
    %60 = arith.addf %58, %59 : vector<1x256xf32>
    %c64_i32 = arith.constant 64 : i32
    %61 = tpu.dynamic_rotate %60 by %c64_i32 dim 1 : vector<1x256xf32>, i32 -> vector<1x256xf32>
    %62 = arith.addf %60, %61 : vector<1x256xf32>
    %c128_i32 = arith.constant 128 : i32
    %63 = tpu.dynamic_rotate %62 by %c128_i32 dim 1 : vector<1x256xf32>, i32 -> vector<1x256xf32>
    %64 = arith.addf %62, %63 : vector<1x256xf32>
    %c0_23 = arith.constant 0 : index
    %c0_24 = arith.constant 0 : index
    %65 = vector.load %arg6[%c0_23, %c0_24] : memref<4x256xf32, #tpu.memory_space<vmem>>, vector<4x256xf32>
    %66 = vector.broadcast %64 : vector<1x256xf32> to vector<4x256xf32>
    %67 = arith.mulf %66, %65 : vector<4x256xf32>
    %cst_25 = arith.constant dense<0.000000e+00> : vector<4xf32>
    %68 = vector.multi_reduction <add>, %67, %cst_25 [1] : vector<4x256xf32> to vector<4xf32>
    %69 = vector.shape_cast %68 : vector<4xf32> to vector<4x1xf32>
    %c0_26 = arith.constant 0 : index
    %c0_27 = arith.constant 0 : index
    %70 = vector.load %arg7[%c0_26, %c0_27] : memref<4x1xf32, #tpu.memory_space<vmem>>, vector<4x1xf32>
    %71 = arith.addf %69, %70 : vector<4x1xf32>
    %cst_28 = arith.constant 0.000000e+00 : f32
    %72 = vector.broadcast %cst_28 : f32 to vector<4x1xf32>
    %73 = arith.maximumf %71, %72 : vector<4x1xf32>
    %c0_29 = arith.constant 0 : index
    %c0_30 = arith.constant 0 : index
    %74 = vector.load %arg8[%c0_29, %c0_30] : memref<4x256xf32, #tpu.memory_space<vmem>>, vector<4x256xf32>
    %75 = vector.broadcast %73 : vector<4x1xf32> to vector<4x256xf32>
    %76 = arith.mulf %75, %74 : vector<4x256xf32>
    %cst_31 = arith.constant dense<0.000000e+00> : vector<256xf32>
    %77 = vector.multi_reduction <add>, %76, %cst_31 [0] : vector<4x256xf32> to vector<256xf32>
    %78 = vector.shape_cast %77 : vector<256xf32> to vector<1x256xf32>
    %c0_32 = arith.constant 0 : index
    %c0_33 = arith.constant 0 : index
    %79 = vector.load %arg9[%c0_32, %c0_33] : memref<1x256xf32, #tpu.memory_space<vmem>>, vector<1x256xf32>
    %80 = arith.addf %78, %79 : vector<1x256xf32>
    %81 = arith.negf %80 : vector<1x256xf32>
    %82 = math.exp %81 : vector<1x256xf32>
    %cst_34 = arith.constant 1.000000e+00 : f32
    %83 = vector.broadcast %cst_34 : f32 to vector<1x256xf32>
    %84 = arith.addf %83, %82 : vector<1x256xf32>
    %85 = arith.divf %83, %84 : vector<1x256xf32>
    %86 = vector.broadcast %85 : vector<1x256xf32> to vector<16x256xf32>
    %87 = arith.mulf %54, %86 : vector<16x256xf32>
    %88 = vector.extract_strided_slice %0 {offsets = [0, 0], sizes = [16, 256], strides = [1, 1]} : vector<32x256xf32> to vector<16x256xf32>
    %89 = arith.addf %87, %88 : vector<16x256xf32>
    %c0_35 = arith.constant 0 : index
    %c0_36 = arith.constant 0 : index
    %90 = vector.load %arg10[%c0_35, %c0_36] : memref<32x256xf32, #tpu.memory_space<vmem>>, vector<16x256xf32>
    tpu.vector_store %arg10[%c0_35, %c0_36], %89 {strides = array<i32>} : memref<32x256xf32, #tpu.memory_space<vmem>>, vector<16x256xf32>,
    %91 = vector.extract_strided_slice %53 {offsets = [16, 0], sizes = [16, 256], strides = [1, 1]} : vector<32x256xf32> to vector<16x256xf32>
    %cst_37 = arith.constant dense<0.000000e+00> : vector<256xf32>
    %92 = vector.multi_reduction <add>, %91, %cst_37 [0] : vector<16x256xf32> to vector<256xf32>
    %93 = vector.shape_cast %92 : vector<256xf32> to vector<1x256xf32>
    %c16_i32_38 = arith.constant 16 : i32
    %94 = tpu.dynamic_rotate %93 by %c16_i32_38 dim 1 : vector<1x256xf32>, i32 -> vector<1x256xf32>
    %95 = arith.addf %93, %94 : vector<1x256xf32>
    %c32_i32_39 = arith.constant 32 : i32
    %96 = tpu.dynamic_rotate %95 by %c32_i32_39 dim 1 : vector<1x256xf32>, i32 -> vector<1x256xf32>
    %97 = arith.addf %95, %96 : vector<1x256xf32>
    %c64_i32_40 = arith.constant 64 : i32
    %98 = tpu.dynamic_rotate %97 by %c64_i32_40 dim 1 : vector<1x256xf32>, i32 -> vector<1x256xf32>
    %99 = arith.addf %97, %98 : vector<1x256xf32>
    %c128_i32_41 = arith.constant 128 : i32
    %100 = tpu.dynamic_rotate %99 by %c128_i32_41 dim 1 : vector<1x256xf32>, i32 -> vector<1x256xf32>
    %101 = arith.addf %99, %100 : vector<1x256xf32>
    %c0_42 = arith.constant 0 : index
    %c0_43 = arith.constant 0 : index
    %102 = vector.load %arg6[%c0_42, %c0_43] : memref<4x256xf32, #tpu.memory_space<vmem>>, vector<4x256xf32>
    %103 = vector.broadcast %101 : vector<1x256xf32> to vector<4x256xf32>
    %104 = arith.mulf %103, %102 : vector<4x256xf32>
    %cst_44 = arith.constant dense<0.000000e+00> : vector<4xf32>
    %105 = vector.multi_reduction <add>, %104, %cst_44 [1] : vector<4x256xf32> to vector<4xf32>
    %106 = vector.shape_cast %105 : vector<4xf32> to vector<4x1xf32>
    %c0_45 = arith.constant 0 : index
    %c0_46 = arith.constant 0 : index
    %107 = vector.load %arg7[%c0_45, %c0_46] : memref<4x1xf32, #tpu.memory_space<vmem>>, vector<4x1xf32>
    %108 = arith.addf %106, %107 : vector<4x1xf32>
    %cst_47 = arith.constant 0.000000e+00 : f32
    %109 = vector.broadcast %cst_47 : f32 to vector<4x1xf32>
    %110 = arith.maximumf %108, %109 : vector<4x1xf32>
    %c0_48 = arith.constant 0 : index
    %c0_49 = arith.constant 0 : index
    %111 = vector.load %arg8[%c0_48, %c0_49] : memref<4x256xf32, #tpu.memory_space<vmem>>, vector<4x256xf32>
    %112 = vector.broadcast %110 : vector<4x1xf32> to vector<4x256xf32>
    %113 = arith.mulf %112, %111 : vector<4x256xf32>
    %cst_50 = arith.constant dense<0.000000e+00> : vector<256xf32>
    %114 = vector.multi_reduction <add>, %113, %cst_50 [0] : vector<4x256xf32> to vector<256xf32>
    %115 = vector.shape_cast %114 : vector<256xf32> to vector<1x256xf32>
    %c0_51 = arith.constant 0 : index
    %c0_52 = arith.constant 0 : index
    %116 = vector.load %arg9[%c0_51, %c0_52] : memref<1x256xf32, #tpu.memory_space<vmem>>, vector<1x256xf32>
    %117 = arith.addf %115, %116 : vector<1x256xf32>
    %118 = arith.negf %117 : vector<1x256xf32>
    %119 = math.exp %118 : vector<1x256xf32>
    %cst_53 = arith.constant 1.000000e+00 : f32
    %120 = vector.broadcast %cst_53 : f32 to vector<1x256xf32>
    %121 = arith.addf %120, %119 : vector<1x256xf32>
    %122 = arith.divf %120, %121 : vector<1x256xf32>
    %123 = vector.broadcast %122 : vector<1x256xf32> to vector<16x256xf32>
    %124 = arith.mulf %91, %123 : vector<16x256xf32>
    %125 = vector.extract_strided_slice %0 {offsets = [16, 0], sizes = [16, 256], strides = [1, 1]} : vector<32x256xf32> to vector<16x256xf32>
    %126 = arith.addf %124, %125 : vector<16x256xf32>
    %c16 = arith.constant 16 : index
    %c0_54 = arith.constant 0 : index
    %127 = vector.load %arg10[%c16, %c0_54] : memref<32x256xf32, #tpu.memory_space<vmem>>, vector<16x256xf32>
    tpu.vector_store %arg10[%c16, %c0_54], %126 {strides = array<i32>} : memref<32x256xf32, #tpu.memory_space<vmem>>, vector<16x256xf32>,
    return
  }
  func.func @transform_0(%arg0: i32) -> (i32, i32) {
    %c0_i32 = arith.constant 0 : i32
    %c0_i32_0 = arith.constant 0 : i32
    return %arg0, %c0_i32 : i32, i32
  }
  func.func @transform_1(%arg0: i32) -> (i32, i32) {
    %c0_i32 = arith.constant 0 : i32
    %c0_i32_0 = arith.constant 0 : i32
    %c0_i32_1 = arith.constant 0 : i32
    return %c0_i32, %c0_i32_0 : i32, i32
  }
  func.func @transform_2(%arg0: i32) -> (i32, i32) {
    %c0_i32 = arith.constant 0 : i32
    %c0_i32_0 = arith.constant 0 : i32
    %c0_i32_1 = arith.constant 0 : i32
    return %c0_i32, %c0_i32_0 : i32, i32
  }
  func.func @transform_3(%arg0: i32) -> (i32, i32) {
    %c0_i32 = arith.constant 0 : i32
    %c0_i32_0 = arith.constant 0 : i32
    %c0_i32_1 = arith.constant 0 : i32
    return %c0_i32, %c0_i32_0 : i32, i32
  }
  func.func @transform_4(%arg0: i32) -> (i32, i32) {
    %c0_i32 = arith.constant 0 : i32
    %c0_i32_0 = arith.constant 0 : i32
    %c0_i32_1 = arith.constant 0 : i32
    return %c0_i32, %c0_i32_0 : i32, i32
  }
  func.func @transform_5(%arg0: i32) -> (i32, i32) {
    %c0_i32 = arith.constant 0 : i32
    %c0_i32_0 = arith.constant 0 : i32
    %c0_i32_1 = arith.constant 0 : i32
    return %c0_i32, %c0_i32_0 : i32, i32
  }
  func.func @transform_6(%arg0: i32) -> (i32, i32) {
    %c0_i32 = arith.constant 0 : i32
    %c0_i32_0 = arith.constant 0 : i32
    %c0_i32_1 = arith.constant 0 : i32
    return %c0_i32, %c0_i32_0 : i32, i32
  }
  func.func @transform_7(%arg0: i32) -> (i32, i32) {
    %c0_i32 = arith.constant 0 : i32
    %c0_i32_0 = arith.constant 0 : i32
    %c0_i32_1 = arith.constant 0 : i32
    return %c0_i32, %c0_i32_0 : i32, i32
  }
  func.func @transform_8(%arg0: i32) -> (i32, i32) {
    %c0_i32 = arith.constant 0 : i32
    %c0_i32_0 = arith.constant 0 : i32
    %c0_i32_1 = arith.constant 0 : i32
    return %c0_i32, %c0_i32_0 : i32, i32
  }
  func.func @transform_9(%arg0: i32) -> (i32, i32) {
    %c0_i32 = arith.constant 0 : i32
    %c0_i32_0 = arith.constant 0 : i32
    return %arg0, %c0_i32 : i32, i32
  }
}

</mosaic_0001>

<llo_original>
// kernel: _rcab_packed_call.1
$region0: #{_rcab_packed_call.1}
  #allocation0 [shape = 'u32[]', space=smem, size = 0x4, offset = 0x4, fixed_abs, tag = 'smem constant byte address 0x4 - core index']
  #allocation1 [shape = 'u32[144,128]{1,0:T(1,128)}', space=vmem, size = 0x12000, scoped, tag = 'internal scratch']
  %s0 = inlined_call_operand.hbm [shape: f32[32,256], index: 0, kind: input, shape index: {}]
  %s1 = inlined_call_operand.hbm [shape: f32[768,256], index: 1, kind: input, shape index: {}]
  %s2 = inlined_call_operand.hbm [shape: f32[1,256], index: 2, kind: input, shape index: {}]
  %s3 = inlined_call_operand.hbm [shape: f32[768,256], index: 3, kind: input, shape index: {}]
  %s4 = inlined_call_operand.vmem [shape: f32[1,256], index: 4, kind: input, shape index: {}]
  %s5 = inlined_call_operand.vmem [shape: f32[4,256], index: 5, kind: input, shape index: {}]
  %s6 = inlined_call_operand.vmem [shape: f32[4,1], index: 6, kind: input, shape index: {}]
  %s7 = inlined_call_operand.vmem [shape: f32[4,256], index: 7, kind: input, shape index: {}]
  %s8 = inlined_call_operand.vmem [shape: f32[1,256], index: 8, kind: input, shape index: {}]
  %s9 = inlined_call_operand.hbm [shape: f32[32,256], index: 9, kind: output, shape index: {}]
  %s10 = sld [smem:[#allocation0]]
  $region62: #{_rcab_packed_call.1} parent=0
    _
  %s12 = ssub.s32 1, %s10
  %s13 = scalar_select 0, %s12, %s10
  $region1: #{_rcab_packed_call.1} parent=0
    #allocation2 [shape = 'u8[32768]{0}', space=vmem, size = 0x8000, scoped, tag = 'input window, operand 0, single buffered']
    #allocation3 [shape = 's32[1]{0}', space=sflag, size = 0x4, scoped, tag = 'scoped memory for _rcab_packed_call.1']
    #allocation4 [shape = 's32[1]{0}', space=sflag, size = 0x4, scoped, tag = 'scoped memory for _rcab_packed_call.1']
    #allocation5 [shape = 'u8[786432]{0}', space=vmem, size = 0xc0000, scoped, tag = 'input window, operand 1, single buffered']
    #allocation6 [shape = 's32[1]{0}', space=sflag, size = 0x4, scoped, tag = 'scoped memory for _rcab_packed_call.1']
    #allocation7 [shape = 'u8[1024]{0}', space=vmem, size = 0x400, scoped, tag = 'input window, operand 2, single buffered']
    #allocation8 [shape = 'u8[786432]{0}', space=vmem, size = 0xc0000, scoped, tag = 'input window, operand 3, single buffered']
    #allocation9 [shape = 's32[1]{0}', space=sflag, size = 0x4, scoped, tag = 'scoped memory for _rcab_packed_call.1']
    #allocation10 [shape = 'u8[32768]{0}', space=vmem, size = 0x8000, scoped, tag = 'output window, operand 0, single buffered']
    %14 = vsyncpa [#allocation3], 0
    %15 = vsyncpa [#allocation6], 0
    %16 = vsyncpa [#allocation9], 0
    %17 = vsyncpa [#allocation4], 0
    // Predicated region
    $region2: #{_rcab_packed_call.1} parent=1 // pred_check
      _
    $region3: #{_rcab_packed_call.1} parent=1 // pred_check_branch
      %19 = sbr.rel (0) target = $region5
    $region4: #{_rcab_packed_call.1} parent=1 // pred_region
      %s21 = ssub.s32 1024, 1024
      %22 = vsyncadd [#allocation3], %s21
      %s23 = sshll.u32 [#allocation2], 4
      %s24 = int_to_ptr.vmem [resolvable:$true] %s23
      %29 = dma.hbm_to_vmem [thread:$0]  %s0, 1024, %s24, [#allocation3], 256, 256, 16
    $region5: #{_rcab_packed_call.1} parent=1 // pred_fallthru
      _
    // Predicated region
    $region6: #{_rcab_packed_call.1} parent=1 // pred_check
      _
    $region7: #{_rcab_packed_call.1} parent=1 // pred_check_branch
      %31 = sbr.rel (0) target = $region9
    $region8: #{_rcab_packed_call.1} parent=1 // pred_region
      %s33 = ssub.s32 24576, 24576
      %34 = vsyncadd [#allocation6], %s33
      %s35 = sshll.u32 [#allocation5], 4
      %s36 = int_to_ptr.vmem [resolvable:$true] %s35
      %41 = dma.hbm_to_vmem [thread:$0]  %s1, 24576, %s36, [#allocation6], 256, 256, 16
    $region9: #{_rcab_packed_call.1} parent=1 // pred_fallthru
      _
    // Predicated region
    $region10: #{_rcab_packed_call.1} parent=1 // pred_check
      _
    $region11: #{_rcab_packed_call.1} parent=1 // pred_check_branch
      %43 = sbr.rel (0) target = $region13
    $region12: #{_rcab_packed_call.1} parent=1 // pred_region
      %s45 = ssub.s32 32, 32
      %46 = vsyncadd [#allocation6], %s45
      %s48 = sshll.u32 [#allocation7], 4
      %s49 = int_to_ptr.vmem [resolvable:$true] %s48
      %51 = dma.hbm_to_vmem [thread:$0]  %s2, 32, %s49, [#allocation6]
    $region13: #{_rcab_packed_call.1} parent=1 // pred_fallthru
      _
    // Predicated region
    $region14: #{_rcab_packed_call.1} parent=1 // pred_check
      _
    $region15: #{_rcab_packed_call.1} parent=1 // pred_check_branch
      %53 = sbr.rel (0) target = $region17
    $region16: #{_rcab_packed_call.1} parent=1 // pred_region
      %s55 = ssub.s32 24576, 24576
      %56 = vsyncadd [#allocation9], %s55
      %s57 = sshll.u32 [#allocation8], 4
      %s58 = int_to_ptr.vmem [resolvable:$true] %s57
      %63 = dma.hbm_to_vmem [thread:$0]  %s3, 24576, %s58, [#allocation9], 256, 256, 16
    $region17: #{_rcab_packed_call.1} parent=1 // pred_fallthru
      _
    // Predicated region
    $region18: #{_rcab_packed_call.1} parent=1 // pred_check
      _
    $region19: #{_rcab_packed_call.1} parent=1 // pred_check_branch
      %65 = sbr.rel (0) target = $region21
    $region20: #{_rcab_packed_call.1} parent=1 // pred_region
      _
    $region21: #{_rcab_packed_call.1} parent=1 // pred_fallthru
      _
    // Predicated region
    $region22: #{_rcab_packed_call.1} parent=1 // pred_check
      _
    $region23: #{_rcab_packed_call.1} parent=1 // pred_check_branch
      %67 = sbr.rel (0) target = $region25
    $region24: #{_rcab_packed_call.1} parent=1 // pred_region
      _
    $region25: #{_rcab_packed_call.1} parent=1 // pred_fallthru
      _
    // Predicated region
    $region26: #{_rcab_packed_call.1} parent=1 // pred_check
      _
    $region27: #{_rcab_packed_call.1} parent=1 // pred_check_branch
      %69 = sbr.rel (0) target = $region29
    $region28: #{_rcab_packed_call.1} parent=1 // pred_region
      _
    $region29: #{_rcab_packed_call.1} parent=1 // pred_fallthru
      _
    // Predicated region
    $region30: #{_rcab_packed_call.1} parent=1 // pred_check
      _
    $region31: #{_rcab_packed_call.1} parent=1 // pred_check_branch
      %71 = sbr.rel (0) target = $region33
    $region32: #{_rcab_packed_call.1} parent=1 // pred_region
      _
    $region33: #{_rcab_packed_call.1} parent=1 // pred_fallthru
      _
    // Predicated region
    $region34: #{_rcab_packed_call.1} parent=1 // pred_check
      _
    $region35: #{_rcab_packed_call.1} parent=1 // pred_check_branch
      %73 = sbr.rel (0) target = $region37
    $region36: #{_rcab_packed_call.1} parent=1 // pred_region
      _
    $region37: #{_rcab_packed_call.1} parent=1 // pred_fallthru
      _
    // Predicated region
    $region38: #{_rcab_packed_call.1} parent=1 // pred_check
      _
    $region39: #{_rcab_packed_call.1} parent=1 // pred_check_branch
      %75 = sbr.rel (0) target = $region41
    $region40: #{_rcab_packed_call.1} parent=1 // pred_region
      %76 = dma.done [#allocation3], 1024
    $region41: #{_rcab_packed_call.1} parent=1 // pred_fallthru
      _
    // Predicated region
    $region42: #{_rcab_packed_call.1} parent=1 // pred_check
      _
    $region43: #{_rcab_packed_call.1} parent=1 // pred_check_branch
      %78 = sbr.rel (0) target = $region45
    $region44: #{_rcab_packed_call.1} parent=1 // pred_region
      %79 = dma.done [#allocation6], 24576
    $region45: #{_rcab_packed_call.1} parent=1 // pred_fallthru
      _
    // Predicated region
    $region46: #{_rcab_packed_call.1} parent=1 // pred_check
      _
    $region47: #{_rcab_packed_call.1} parent=1 // pred_check_branch
      %81 = sbr.rel (0) target = $region49
    $region48: #{_rcab_packed_call.1} parent=1 // pred_region
      %82 = dma.done [#allocation6], 32
    $region49: #{_rcab_packed_call.1} parent=1 // pred_fallthru
      _
    // Predicated region
    $region50: #{_rcab_packed_call.1} parent=1 // pred_check
      _
    $region51: #{_rcab_packed_call.1} parent=1 // pred_check_branch
      %84 = sbr.rel (0) target = $region53
    $region52: #{_rcab_packed_call.1} parent=1 // pred_region
      %85 = dma.done [#allocation9], 24576
    $region53: #{_rcab_packed_call.1} parent=1 // pred_fallthru
      _
    %v86 = vld [vmem:[#allocation2] sm:$0xff]
    %v87 = vld [vmem:[#allocation2 + $0x8] sm:$0xff]
    %v88 = vld [vmem:[#allocation2 + $0x10] sm:$0xff]
    %v89 = vld [vmem:[#allocation2 + $0x18] sm:$0xff]
    %v90 = vld [vmem:[#allocation2 + $0x20] sm:$0xff]
    %v91 = vld [vmem:[#allocation2 + $0x28] sm:$0xff]
    %v92 = vld [vmem:[#allocation2 + $0x30] sm:$0xff]
    %v93 = vld [vmem:[#allocation2 + $0x38] sm:$0xff]
    %v94 = vlaneseq
    %v95 = vshrl.u32 %v94, 7
    %v96 = vadd.s32 %v95, 8
    %v97 = vadd.s32 %v95, 16
    %v98 = vadd.s32 %v95, 24
    %vm99 = vcmp.lt.s32.totalorder %v95, 0
    %v100 = vsub.s32 0, %v95
    %v101 = vsel %vm99, %v100, %v95
    %v102 = vshrl.u32 %v101, 4
    %v103 = vand.u32 %v101, 15
    %v104 = vsub.s32 0, %v103
    %v105 = vsel %vm99, %v104, %v103
    %vm106 = vcmp.lt.s32.totalorder %v96, 0
    %v107 = vsub.s32 0, %v96
    %v108 = vsel %vm106, %v107, %v96
    %v109 = vshrl.u32 %v108, 4
    %v110 = vand.u32 %v108, 15
    %v111 = vsub.s32 0, %v110
    %v112 = vsel %vm106, %v111, %v110
    %vm113 = vcmp.lt.s32.totalorder %v97, 0
    %v114 = vsub.s32 0, %v97
    %v115 = vsel %vm113, %v114, %v97
    %v116 = vshrl.u32 %v115, 4
    %v117 = vand.u32 %v115, 15
    %v118 = vsub.s32 0, %v117
    %v119 = vsel %vm113, %v118, %v117
    %vm120 = vcmp.lt.s32.totalorder %v98, 0
    %v121 = vsub.s32 0, %v98
    %v122 = vsel %vm120, %v121, %v98
    %v123 = vshrl.u32 %v122, 4
    %v124 = vand.u32 %v122, 15
    %v125 = vsub.s32 0, %v124
    %v126 = vsel %vm120, %v125, %v124
    %vm127 = vcmp.ne.s32.totalorder %v105, 0
    %vm128 = vcmp.ne.s32.totalorder %v112, 0
    %vm129 = vcmp.ne.s32.totalorder %v119, 0
    %vm130 = vcmp.ne.s32.totalorder %v126, 0
    %vm131 = vcmp.lt.s32.totalorder %v105, 0
    %vm132 = vcmp.lt.s32.totalorder %v112, 0
    %vm133 = vcmp.lt.s32.totalorder %v119, 0
    %vm134 = vcmp.lt.s32.totalorder %v126, 0
    %vm135 = vmand %vm131, %vm127
    %vm136 = vmand %vm132, %vm128
    %vm137 = vmand %vm133, %vm129
    %vm138 = vmand %vm134, %vm130
    %v139 = vadd.s32 %v105, 16
    %v140 = vadd.s32 %v112, 16
    %v141 = vadd.s32 %v119, 16
    %v142 = vadd.s32 %v126, 16
    %v143 = vsel %vm135, %v139, %v105
    %v144 = vsel %vm136, %v140, %v112
    %v145 = vsel %vm137, %v141, %v119
    %v146 = vsel %vm138, %v142, %v126
    %vm147 = vcmp.ne.s32.totalorder %v143, 0
    %vm148 = vcmp.ne.s32.totalorder %v144, 0
    %vm149 = vcmp.ne.s32.totalorder %v145, 0
    %vm150 = vcmp.ne.s32.totalorder %v146, 0
    %vm151 = vcmp.ne.s32.totalorder %v143, 15
    %vm152 = vcmp.ne.s32.totalorder %v144, 15
    %vm153 = vcmp.ne.s32.totalorder %v145, 15
    %vm154 = vcmp.ne.s32.totalorder %v146, 15
    %vm163 = vcmask 1040384
    %v164 = vrot.slane %v86, 7
    %v165 = vrot.slane %v87, 7
    %v166 = vrot.slane %v88, 7
    %v167 = vsel %vm163, %v164, %v166
    %v168 = vrot.slane %v89, 7
    %v169 = vsel %vm163, %v165, %v168
    %v170 = vrot.slane %v90, 7
    %v171 = vsel %vm163, %v166, %v170
    %v172 = vrot.slane %v91, 7
    %v173 = vsel %vm163, %v168, %v172
    %v174 = vrot.slane %v92, 7
    %v175 = vsel %vm163, %v170, %v174
    %v176 = vrot.slane %v93, 7
    %v177 = vsel %vm163, %v172, %v176
    %v186 = vsel %vm163, 0.0, %v164
    %v187 = vsel %vm163, 0.0, %v165
    %vm188 = vcmask 1046528
    %v189 = vrot.slane %v86, 1
    %v190 = vrot.slane %v88, 1
    %v191 = vsel %vm188, %v189, %v190
    %v192 = vrot.slane %v87, 1
    %v193 = vrot.slane %v89, 1
    %v194 = vsel %vm188, %v192, %v193
    %v195 = vrot.slane %v90, 1
    %v196 = vsel %vm188, %v190, %v195
    %v197 = vrot.slane %v91, 1
    %v198 = vsel %vm188, %v193, %v197
    %v199 = vrot.slane %v92, 1
    %v200 = vsel %vm188, %v195, %v199
    %v201 = vrot.slane %v93, 1
    %v202 = vsel %vm188, %v197, %v201
    %v211 = vsel %vm188, %v199, 0.0
    %v212 = vsel %vm188, %v201, 0.0
    %v213 = vsel %vm147, %v186, 0.0
    %v214 = vsel %vm147, %v187, 0.0
    %v215 = vsel %vm148, %v167, 0.0
    %v216 = vsel %vm148, %v169, 0.0
    %v217 = vsel %vm149, %v171, 0.0
    %v218 = vsel %vm149, %v173, 0.0
    %v219 = vsel %vm150, %v175, 0.0
    %v220 = vsel %vm150, %v177, 0.0
    %v221 = vsel %vm151, %v191, 0.0
    %v222 = vsel %vm151, %v194, 0.0
    %v223 = vsel %vm152, %v196, 0.0
    %v224 = vsel %vm152, %v198, 0.0
    %v225 = vsel %vm153, %v200, 0.0
    %v226 = vsel %vm153, %v202, 0.0
    %v227 = vsel %vm154, %v211, 0.0
    %v228 = vsel %vm154, %v212, 0.0
    %v229 = vld [vmem:[#allocation5] sm:$0xff]
    %v230 = vld [vmem:[#allocation5 + $0x8] sm:$0xff]
    %v231 = vld [vmem:[#allocation5 + $0x10] sm:$0xff]
    %v232 = vld [vmem:[#allocation5 + $0x18] sm:$0xff]
    %v233 = vld [vmem:[#allocation5 + $0x20] sm:$0xff]
    %v234 = vld [vmem:[#allocation5 + $0x28] sm:$0xff]
    %v235 = vld [vmem:[#allocation5 + $0x30] sm:$0xff]
    %v236 = vld [vmem:[#allocation5 + $0x38] sm:$0xff]
    %v237 = vld [vmem:[#allocation5 + $0x40] sm:$0xff]
    %v238 = vld [vmem:[#allocation5 + $0x48] sm:$0xff]
    %v239 = vld [vmem:[#allocation5 + $0x50] sm:$0xff]
    %v240 = vld [vmem:[#allocation5 + $0x58] sm:$0xff]
    %v241 = vld [vmem:[#allocation5 + $0x60] sm:$0xff]
    %v242 = vld [vmem:[#allocation5 + $0x68] sm:$0xff]
    %v243 = vld [vmem:[#allocation5 + $0x70] sm:$0xff]
    %v244 = vld [vmem:[#allocation5 + $0x78] sm:$0xff]
    %v245 = vld [vmem:[#allocation5 + $0x80] sm:$0xff]
    %v246 = vld [vmem:[#allocation5 + $0x88] sm:$0xff]
    %v247 = vld [vmem:[#allocation5 + $0x90] sm:$0xff]
    %v248 = vld [vmem:[#allocation5 + $0x98] sm:$0xff]
    %v249 = vld [vmem:[#allocation5 + $0xa0] sm:$0xff]
    %v250 = vld [vmem:[#allocation5 + $0xa8] sm:$0xff]
    %v251 = vld [vmem:[#allocation5 + $0xb0] sm:$0xff]
    %v252 = vld [vmem:[#allocation5 + $0xb8] sm:$0xff]
    %v253 = vld [vmem:[#allocation5 + $0xc0] sm:$0xff]
    %v254 = vld [vmem:[#allocation5 + $0xc8] sm:$0xff]
    %v255 = vld [vmem:[#allocation5 + $0xd0] sm:$0xff]
    %v256 = vld [vmem:[#allocation5 + $0xd8] sm:$0xff]
    %v257 = vld [vmem:[#allocation5 + $0xe0] sm:$0xff]
    %v258 = vld [vmem:[#allocation5 + $0xe8] sm:$0xff]
    %v259 = vld [vmem:[#allocation5 + $0xf0] sm:$0xff]
    %v260 = vld [vmem:[#allocation5 + $0xf8] sm:$0xff]
    %v261 = vld [vmem:[#allocation5 + $0x100] sm:$0xff]
    %v262 = vld [vmem:[#allocation5 + $0x108] sm:$0xff]
    %v263 = vld [vmem:[#allocation5 + $0x110] sm:$0xff]
    %v264 = vld [vmem:[#allocation5 + $0x118] sm:$0xff]
    %v265 = vld [vmem:[#allocation5 + $0x120] sm:$0xff]
    %v266 = vld [vmem:[#allocation5 + $0x128] sm:$0xff]
    %v267 = vld [vmem:[#allocation5 + $0x130] sm:$0xff]
    %v268 = vld [vmem:[#allocation5 + $0x138] sm:$0xff]
    %v269 = vld [vmem:[#allocation5 + $0x140] sm:$0xff]
    %v270 = vld [vmem:[#allocation5 + $0x148] sm:$0xff]
    %v271 = vld [vmem:[#allocation5 + $0x150] sm:$0xff]
    %v272 = vld [vmem:[#allocation5 + $0x158] sm:$0xff]
    %v273 = vld [vmem:[#allocation5 + $0x160] sm:$0xff]
    %v274 = vld [vmem:[#allocation5 + $0x168] sm:$0xff]
    %v275 = vld [vmem:[#allocation5 + $0x170] sm:$0xff]
    %v276 = vld [vmem:[#allocation5 + $0x178] sm:$0xff]
    %v277 = vld [vmem:[#allocation5 + $0x180] sm:$0xff]
    %v278 = vld [vmem:[#allocation5 + $0x188] sm:$0xff]
    %v279 = vld [vmem:[#allocation5 + $0x190] sm:$0xff]
    %v280 = vld [vmem:[#allocation5 + $0x198] sm:$0xff]
    %v281 = vld [vmem:[#allocation5 + $0x1a0] sm:$0xff]
    %v282 = vld [vmem:[#allocation5 + $0x1a8] sm:$0xff]
    %v283 = vld [vmem:[#allocation5 + $0x1b0] sm:$0xff]
    %v284 = vld [vmem:[#allocation5 + $0x1b8] sm:$0xff]
    %v285 = vld [vmem:[#allocation5 + $0x1c0] sm:$0xff]
    %v286 = vld [vmem:[#allocation5 + $0x1c8] sm:$0xff]
    %v287 = vld [vmem:[#allocation5 + $0x1d0] sm:$0xff]
    %v288 = vld [vmem:[#allocation5 + $0x1d8] sm:$0xff]
    %v289 = vld [vmem:[#allocation5 + $0x1e0] sm:$0xff]
    %v290 = vld [vmem:[#allocation5 + $0x1e8] sm:$0xff]
    %v291 = vld [vmem:[#allocation5 + $0x1f0] sm:$0xff]
    %v292 = vld [vmem:[#allocation5 + $0x1f8] sm:$0xff]
    %v293 = vld [vmem:[#allocation5 + $0x200] sm:$0xff]
    %v294 = vld [vmem:[#allocation5 + $0x208] sm:$0xff]
    %v295 = vld [vmem:[#allocation5 + $0x210] sm:$0xff]
    %v296 = vld [vmem:[#allocation5 + $0x218] sm:$0xff]
    %v297 = vld [vmem:[#allocation5 + $0x220] sm:$0xff]
    %v298 = vld [vmem:[#allocation5 + $0x228] sm:$0xff]
    %v299 = vld [vmem:[#allocation5 + $0x230] sm:$0xff]
    %v300 = vld [vmem:[#allocation5 + $0x238] sm:$0xff]
    %v301 = vld [vmem:[#allocation5 + $0x240] sm:$0xff]
    %v302 = vld [vmem:[#allocation5 + $0x248] sm:$0xff]
    %v303 = vld [vmem:[#allocation5 + $0x250] sm:$0xff]
    %v304 = vld [vmem:[#allocation5 + $0x258] sm:$0xff]
    %v305 = vld [vmem:[#allocation5 + $0x260] sm:$0xff]
    %v306 = vld [vmem:[#allocation5 + $0x268] sm:$0xff]
    %v307 = vld [vmem:[#allocation5 + $0x270] sm:$0xff]
    %v308 = vld [vmem:[#allocation5 + $0x278] sm:$0xff]
    %v309 = vld [vmem:[#allocation5 + $0x280] sm:$0xff]
    %v310 = vld [vmem:[#allocation5 + $0x288] sm:$0xff]
    %v311 = vld [vmem:[#allocation5 + $0x290] sm:$0xff]
    %v312 = vld [vmem:[#allocation5 + $0x298] sm:$0xff]
    %v313 = vld [vmem:[#allocation5 + $0x2a0] sm:$0xff]
    %v314 = vld [vmem:[#allocation5 + $0x2a8] sm:$0xff]
    %v315 = vld [vmem:[#allocation5 + $0x2b0] sm:$0xff]
    %v316 = vld [vmem:[#allocation5 + $0x2b8] sm:$0xff]
    %v317 = vld [vmem:[#allocation5 + $0x2c0] sm:$0xff]
    %v318 = vld [vmem:[#allocation5 + $0x2c8] sm:$0xff]
    %v319 = vld [vmem:[#allocation5 + $0x2d0] sm:$0xff]
    %v320 = vld [vmem:[#allocation5 + $0x2d8] sm:$0xff]
    %v321 = vld [vmem:[#allocation5 + $0x2e0] sm:$0xff]
    %v322 = vld [vmem:[#allocation5 + $0x2e8] sm:$0xff]
    %v323 = vld [vmem:[#allocation5 + $0x2f0] sm:$0xff]
    %v324 = vld [vmem:[#allocation5 + $0x2f8] sm:$0xff]
    %v325 = vld [vmem:[#allocation5 + $0x300] sm:$0xff]
    %v326 = vld [vmem:[#allocation5 + $0x308] sm:$0xff]
    %v327 = vld [vmem:[#allocation5 + $0x310] sm:$0xff]
    %v328 = vld [vmem:[#allocation5 + $0x318] sm:$0xff]
    %v329 = vld [vmem:[#allocation5 + $0x320] sm:$0xff]
    %v330 = vld [vmem:[#allocation5 + $0x328] sm:$0xff]
    %v331 = vld [vmem:[#allocation5 + $0x330] sm:$0xff]
    %v332 = vld [vmem:[#allocation5 + $0x338] sm:$0xff]
    %v333 = vld [vmem:[#allocation5 + $0x340] sm:$0xff]
    %v334 = vld [vmem:[#allocation5 + $0x348] sm:$0xff]
    %v335 = vld [vmem:[#allocation5 + $0x350] sm:$0xff]
    %v336 = vld [vmem:[#allocation5 + $0x358] sm:$0xff]
    %v337 = vld [vmem:[#allocation5 + $0x360] sm:$0xff]
    %v338 = vld [vmem:[#allocation5 + $0x368] sm:$0xff]
    %v339 = vld [vmem:[#allocation5 + $0x370] sm:$0xff]
    %v340 = vld [vmem:[#allocation5 + $0x378] sm:$0xff]
    %v341 = vld [vmem:[#allocation5 + $0x380] sm:$0xff]
    %v342 = vld [vmem:[#allocation5 + $0x388] sm:$0xff]
    %v343 = vld [vmem:[#allocation5 + $0x390] sm:$0xff]
    %v344 = vld [vmem:[#allocation5 + $0x398] sm:$0xff]
    %v345 = vld [vmem:[#allocation5 + $0x3a0] sm:$0xff]
    %v346 = vld [vmem:[#allocation5 + $0x3a8] sm:$0xff]
    %v347 = vld [vmem:[#allocation5 + $0x3b0] sm:$0xff]
    %v348 = vld [vmem:[#allocation5 + $0x3b8] sm:$0xff]
    %v349 = vld [vmem:[#allocation5 + $0x3c0] sm:$0xff]
    %v350 = vld [vmem:[#allocation5 + $0x3c8] sm:$0xff]
    %v351 = vld [vmem:[#allocation5 + $0x3d0] sm:$0xff]
    %v352 = vld [vmem:[#allocation5 + $0x3d8] sm:$0xff]
    %v353 = vld [vmem:[#allocation5 + $0x3e0] sm:$0xff]
    %v354 = vld [vmem:[#allocation5 + $0x3e8] sm:$0xff]
    %v355 = vld [vmem:[#allocation5 + $0x3f0] sm:$0xff]
    %v356 = vld [vmem:[#allocation5 + $0x3f8] sm:$0xff]
    %v357 = vld [vmem:[#allocation5 + $0x400] sm:$0xff]
    %v358 = vld [vmem:[#allocation5 + $0x408] sm:$0xff]
    %v359 = vld [vmem:[#allocation5 + $0x410] sm:$0xff]
    %v360 = vld [vmem:[#allocation5 + $0x418] sm:$0xff]
    %v361 = vld [vmem:[#allocation5 + $0x420] sm:$0xff]
    %v362 = vld [vmem:[#allocation5 + $0x428] sm:$0xff]
    %v363 = vld [vmem:[#allocation5 + $0x430] sm:$0xff]
    %v364 = vld [vmem:[#allocation5 + $0x438] sm:$0xff]
    %v365 = vld [vmem:[#allocation5 + $0x440] sm:$0xff]
    %v366 = vld [vmem:[#allocation5 + $0x448] sm:$0xff]
    %v367 = vld [vmem:[#allocation5 + $0x450] sm:$0xff]
    %v368 = vld [vmem:[#allocation5 + $0x458] sm:$0xff]
    %v369 = vld [vmem:[#allocation5 + $0x460] sm:$0xff]
    %v370 = vld [vmem:[#allocation5 + $0x468] sm:$0xff]
    %v371 = vld [vmem:[#allocation5 + $0x470] sm:$0xff]
    %v372 = vld [vmem:[#allocation5 + $0x478] sm:$0xff]
    %v373 = vld [vmem:[#allocation5 + $0x480] sm:$0xff]
    %v374 = vld [vmem:[#allocation5 + $0x488] sm:$0xff]
    %v375 = vld [vmem:[#allocation5 + $0x490] sm:$0xff]
    %v376 = vld [vmem:[#allocation5 + $0x498] sm:$0xff]
    %v377 = vld [vmem:[#allocation5 + $0x4a0] sm:$0xff]
    %v378 = vld [vmem:[#allocation5 + $0x4a8] sm:$0xff]
    %v379 = vld [vmem:[#allocation5 + $0x4b0] sm:$0xff]
    %v380 = vld [vmem:[#allocation5 + $0x4b8] sm:$0xff]
    %v381 = vld [vmem:[#allocation5 + $0x4c0] sm:$0xff]
    %v382 = vld [vmem:[#allocation5 + $0x4c8] sm:$0xff]
    %v383 = vld [vmem:[#allocation5 + $0x4d0] sm:$0xff]
    %v384 = vld [vmem:[#allocation5 + $0x4d8] sm:$0xff]
    %v385 = vld [vmem:[#allocation5 + $0x4e0] sm:$0xff]
    %v386 = vld [vmem:[#allocation5 + $0x4e8] sm:$0xff]
    %v387 = vld [vmem:[#allocation5 + $0x4f0] sm:$0xff]
    %v388 = vld [vmem:[#allocation5 + $0x4f8] sm:$0xff]
    %v389 = vld [vmem:[#allocation5 + $0x500] sm:$0xff]
    %v390 = vld [vmem:[#allocation5 + $0x508] sm:$0xff]
    %v391 = vld [vmem:[#allocation5 + $0x510] sm:$0xff]
    %v392 = vld [vmem:[#allocation5 + $0x518] sm:$0xff]
    %v393 = vld [vmem:[#allocation5 + $0x520] sm:$0xff]
    %v394 = vld [vmem:[#allocation5 + $0x528] sm:$0xff]
    %v395 = vld [vmem:[#allocation5 + $0x530] sm:$0xff]
    %v396 = vld [vmem:[#allocation5 + $0x538] sm:$0xff]
    %v397 = vld [vmem:[#allocation5 + $0x540] sm:$0xff]
    %v398 = vld [vmem:[#allocation5 + $0x548] sm:$0xff]
    %v399 = vld [vmem:[#allocation5 + $0x550] sm:$0xff]
    %v400 = vld [vmem:[#allocation5 + $0x558] sm:$0xff]
    %v401 = vld [vmem:[#allocation5 + $0x560] sm:$0xff]
    %v402 = vld [vmem:[#allocation5 + $0x568] sm:$0xff]
    %v403 = vld [vmem:[#allocation5 + $0x570] sm:$0xff]
    %v404 = vld [vmem:[#allocation5 + $0x578] sm:$0xff]
    %v405 = vld [vmem:[#allocation5 + $0x580] sm:$0xff]
    %v406 = vld [vmem:[#allocation5 + $0x588] sm:$0xff]
    %v407 = vld [vmem:[#allocation5 + $0x590] sm:$0xff]
    %v408 = vld [vmem:[#allocation5 + $0x598] sm:$0xff]
    %v409 = vld [vmem:[#allocation5 + $0x5a0] sm:$0xff]
    %v410 = vld [vmem:[#allocation5 + $0x5a8] sm:$0xff]
    %v411 = vld [vmem:[#allocation5 + $0x5b0] sm:$0xff]
    %v412 = vld [vmem:[#allocation5 + $0x5b8] sm:$0xff]
    %v413 = vld [vmem:[#allocation5 + $0x5c0] sm:$0xff]
    %v414 = vld [vmem:[#allocation5 + $0x5c8] sm:$0xff]
    %v415 = vld [vmem:[#allocation5 + $0x5d0] sm:$0xff]
    %v416 = vld [vmem:[#allocation5 + $0x5d8] sm:$0xff]
    %v417 = vld [vmem:[#allocation5 + $0x5e0] sm:$0xff]
    %v418 = vld [vmem:[#allocation5 + $0x5e8] sm:$0xff]
    %v419 = vld [vmem:[#allocation5 + $0x5f0] sm:$0xff]
    %v420 = vld [vmem:[#allocation5 + $0x5f8] sm:$0xff]
    %v421 = vld [vmem:[#allocation7] sm:$0x3]
    %v423 = vlaneseq
    %v424 = vshrl.u32 %v423, 7
    %v425 = vsub.s32 0, %v424
    %v426 = vrot.slane %v421, %v425
    %v427 = vlaneseq
    %v428 = vshrl.u32 %v427, 7
    %v429 = vsub.s32 1, %v428
    %v430 = vrot.slane %v421, %v429
    %433 = vmatprep.subr.mxu0 %v230
    %434 = vmatpush1.msra.mxu0 %v229
    %435 = vmatprep.subr.mxu0 %v232
    %436 = vmatpush1.msra.mxu0 %v231
    %437 = vmatprep.subr.mxu0 %v234
    %438 = vmatpush1.msra.mxu0 %v233
    %439 = vmatprep.subr.mxu0 %v236
    %440 = vmatpush1.msra.mxu0 %v235
    %441 = vmatprep.subr.mxu0 %v238
    %442 = vmatpush1.msra.mxu0 %v237
    %443 = vmatprep.subr.mxu0 %v240
    %444 = vmatpush1.msra.mxu0 %v239
    %445 = vmatprep.subr.mxu0 %v242
    %446 = vmatpush1.msra.mxu0 %v241
    %447 = vmatprep.subr.mxu0 %v244
    %448 = vmatpush1.msra.mxu0 %v243
    %449 = vmatprep.subr.mxu0 %v246
    %450 = vmatpush1.msra.mxu0 %v245
    %451 = vmatprep.subr.mxu0 %v248
    %452 = vmatpush1.msra.mxu0 %v247
    %453 = vmatprep.subr.mxu0 %v250
    %454 = vmatpush1.msra.mxu0 %v249
    %455 = vmatprep.subr.mxu0 %v252
    %456 = vmatpush1.msra.mxu0 %v251
    %457 = vmatprep.subr.mxu0 %v254
    %458 = vmatpush1.msra.mxu0 %v253
    %459 = vmatprep.subr.mxu0 %v256
    %460 = vmatpush1.msra.mxu0 %v255
    %461 = vmatprep.subr.mxu0 %v258
    %462 = vmatpush1.msra.mxu0 %v257
    %463 = vmatprep.subr.mxu0 %v260
    %464 = vmatpush1.msra.mxu0 %v259
    %465 = vmatprep.subr.mxu0 %v262
    %466 = vmatpush1.msra.mxu0 %v261
    %467 = vmatprep.subr.mxu0 %v264
    %468 = vmatpush1.msra.mxu0 %v263
    %469 = vmatprep.subr.mxu0 %v266
    %470 = vmatpush1.msra.mxu0 %v265
    %471 = vmatprep.subr.mxu0 %v268
    %472 = vmatpush1.msra.mxu0 %v267
    %473 = vmatprep.subr.mxu0 %v270
    %474 = vmatpush1.msra.mxu0 %v269
    %475 = vmatprep.subr.mxu0 %v272
    %476 = vmatpush1.msra.mxu0 %v271
    %477 = vmatprep.subr.mxu0 %v274
    %478 = vmatpush1.msra.mxu0 %v273
    %479 = vmatprep.subr.mxu0 %v276
    %480 = vmatpush1.msra.mxu0 %v275
    %481 = vmatprep.subr.mxu0 %v278
    %482 = vmatpush1.msra.mxu0 %v277
    %483 = vmatprep.subr.mxu0 %v280
    %484 = vmatpush1.msra.mxu0 %v279
    %485 = vmatprep.subr.mxu0 %v282
    %486 = vmatpush1.msra.mxu0 %v281
    %487 = vmatprep.subr.mxu0 %v284
    %488 = vmatpush1.msra.mxu0 %v283
    %489 = vmatprep.subr.mxu0 %v286
    %490 = vmatpush1.msra.mxu0 %v285
    %491 = vmatprep.subr.mxu0 %v288
    %492 = vmatpush1.msra.mxu0 %v287
    %493 = vmatprep.subr.mxu0 %v290
    %494 = vmatpush1.msra.mxu0 %v289
    %495 = vmatprep.subr.mxu0 %v292
    %496 = vmatpush1.msra.mxu0 %v291
    %497 = vmatprep.mubr.f32.mxu0 %v214
    %498 = vmatmul.mubr.f32.gmra.mrb[0].mxu0 %v213
    %v499 = vpop.f32.mrb[0].mxu0
    %v500 = vadd.f32 %v426, %v499
    %v501 = vpop.f32.mrb[0].mxu0
    %v502 = vadd.f32 %v430, %v501
    %503 = vmatprep.mubr.f32.mxu0 %v216
    %504 = vmatmul.mubr.f32.gmra.mrb[0].mxu0 %v215
    %v505 = vpop.f32.mrb[0].mxu0
    %v506 = vadd.f32 %v426, %v505
    %v507 = vpop.f32.mrb[0].mxu0
    %v508 = vadd.f32 %v430, %v507
    %509 = vmatprep.mubr.f32.mxu0 %v218
    %510 = vmatmul.mubr.f32.gmra.mrb[0].mxu0 %v217
    %v511 = vpop.f32.mrb[0].mxu0
    %v512 = vadd.f32 %v426, %v511
    %v513 = vpop.f32.mrb[0].mxu0
    %v514 = vadd.f32 %v430, %v513
    %515 = vmatprep.mubr.f32.mxu0 %v220
    %516 = vmatmul.mubr.f32.gmra.mrb[0].mxu0 %v219
    %v517 = vpop.f32.mrb[0].mxu0
    %v518 = vadd.f32 %v426, %v517
    %v519 = vpop.f32.mrb[0].mxu0
    %v520 = vadd.f32 %v430, %v519
    %521 = vdwg.mxu0
    %522 = vmatprep.subr.mxu0 %v294
    %523 = vmatpush1.msra.mxu0 %v293
    %524 = vmatprep.subr.mxu0 %v296
    %525 = vmatpush1.msra.mxu0 %v295
    %526 = vmatprep.subr.mxu0 %v298
    %527 = vmatpush1.msra.mxu0 %v297
    %528 = vmatprep.subr.mxu0 %v300
    %529 = vmatpush1.msra.mxu0 %v299
    %530 = vmatprep.subr.mxu0 %v302
    %531 = vmatpush1.msra.mxu0 %v301
    %532 = vmatprep.subr.mxu0 %v304
    %533 = vmatpush1.msra.mxu0 %v303
    %534 = vmatprep.subr.mxu0 %v306
    %535 = vmatpush1.msra.mxu0 %v305
    %536 = vmatprep.subr.mxu0 %v308
    %537 = vmatpush1.msra.mxu0 %v307
    %538 = vmatprep.subr.mxu0 %v310
    %539 = vmatpush1.msra.mxu0 %v309
    %540 = vmatprep.subr.mxu0 %v312
    %541 = vmatpush1.msra.mxu0 %v311
    %542 = vmatprep.subr.mxu0 %v314
    %543 = vmatpush1.msra.mxu0 %v313
    %544 = vmatprep.subr.mxu0 %v316
    %545 = vmatpush1.msra.mxu0 %v315
    %546 = vmatprep.subr.mxu0 %v318
    %547 = vmatpush1.msra.mxu0 %v317
    %548 = vmatprep.subr.mxu0 %v320
    %549 = vmatpush1.msra.mxu0 %v319
    %550 = vmatprep.subr.mxu0 %v322
    %551 = vmatpush1.msra.mxu0 %v321
    %552 = vmatprep.subr.mxu0 %v324
    %553 = vmatpush1.msra.mxu0 %v323
    %554 = vmatprep.subr.mxu0 %v326
    %555 = vmatpush1.msra.mxu0 %v325
    %556 = vmatprep.subr.mxu0 %v328
    %557 = vmatpush1.msra.mxu0 %v327
    %558 = vmatprep.subr.mxu0 %v330
    %559 = vmatpush1.msra.mxu0 %v329
    %560 = vmatprep.subr.mxu0 %v332
    %561 = vmatpush1.msra.mxu0 %v331
    %562 = vmatprep.subr.mxu0 %v334
    %563 = vmatpush1.msra.mxu0 %v333
    %564 = vmatprep.subr.mxu0 %v336
    %565 = vmatpush1.msra.mxu0 %v335
    %566 = vmatprep.subr.mxu0 %v338
    %567 = vmatpush1.msra.mxu0 %v337
    %568 = vmatprep.subr.mxu0 %v340
    %569 = vmatpush1.msra.mxu0 %v339
    %570 = vmatprep.subr.mxu0 %v342
    %571 = vmatpush1.msra.mxu0 %v341
    %572 = vmatprep.subr.mxu0 %v344
    %573 = vmatpush1.msra.mxu0 %v343
    %574 = vmatprep.subr.mxu0 %v346
    %575 = vmatpush1.msra.mxu0 %v345
    %576 = vmatprep.subr.mxu0 %v348
    %577 = vmatpush1.msra.mxu0 %v347
    %578 = vmatprep.subr.mxu0 %v350
    %579 = vmatpush1.msra.mxu0 %v349
    %580 = vmatprep.subr.mxu0 %v352
    %581 = vmatpush1.msra.mxu0 %v351
    %582 = vmatprep.subr.mxu0 %v354
    %583 = vmatpush1.msra.mxu0 %v353
    %584 = vmatprep.subr.mxu0 %v356
    %585 = vmatpush1.msra.mxu0 %v355
    %586 = vmatprep.mubr.f32.mxu0 %v87
    %587 = vmatmul.mubr.f32.gmra.mrb[0].mxu0 %v86
    %v588 = vpop.f32.mrb[0].mxu0
    %v589 = vadd.f32 %v500, %v588
    %v590 = vpop.f32.mrb[0].mxu0
    %v591 = vadd.f32 %v502, %v590
    %592 = vmatprep.mubr.f32.mxu0 %v89
    %593 = vmatmul.mubr.f32.gmra.mrb[0].mxu0 %v88
    %v594 = vpop.f32.mrb[0].mxu0
    %v595 = vadd.f32 %v506, %v594
    %v596 = vpop.f32.mrb[0].mxu0
    %v597 = vadd.f32 %v508, %v596
    %598 = vmatprep.mubr.f32.mxu0 %v91
    %599 = vmatmul.mubr.f32.gmra.mrb[0].mxu0 %v90
    %v600 = vpop.f32.mrb[0].mxu0
    %v601 = vadd.f32 %v512, %v600
    %v602 = vpop.f32.mrb[0].mxu0
    %v603 = vadd.f32 %v514, %v602
    %604 = vmatprep.mubr.f32.mxu0 %v93
    %605 = vmatmul.mubr.f32.gmra.mrb[0].mxu0 %v92
    %v606 = vpop.f32.mrb[0].mxu0
    %v607 = vadd.f32 %v518, %v606
    %v608 = vpop.f32.mrb[0].mxu0
    %v609 = vadd.f32 %v520, %v608
    %610 = vdwg.mxu0
    %611 = vmatprep.subr.mxu0 %v358
    %612 = vmatpush1.msra.mxu0 %v357
    %613 = vmatprep.subr.mxu0 %v360
    %614 = vmatpush1.msra.mxu0 %v359
    %615 = vmatprep.subr.mxu0 %v362
    %616 = vmatpush1.msra.mxu0 %v361
    %617 = vmatprep.subr.mxu0 %v364
    %618 = vmatpush1.msra.mxu0 %v363
    %619 = vmatprep.subr.mxu0 %v366
    %620 = vmatpush1.msra.mxu0 %v365
    %621 = vmatprep.subr.mxu0 %v368
    %622 = vmatpush1.msra.mxu0 %v367
    %623 = vmatprep.subr.mxu0 %v370
    %624 = vmatpush1.msra.mxu0 %v369
    %625 = vmatprep.subr.mxu0 %v372
    %626 = vmatpush1.msra.mxu0 %v371
    %627 = vmatprep.subr.mxu0 %v374
    %628 = vmatpush1.msra.mxu0 %v373
    %629 = vmatprep.subr.mxu0 %v376
    %630 = vmatpush1.msra.mxu0 %v375
    %631 = vmatprep.subr.mxu0 %v378
    %632 = vmatpush1.msra.mxu0 %v377
    %633 = vmatprep.subr.mxu0 %v380
    %634 = vmatpush1.msra.mxu0 %v379
    %635 = vmatprep.subr.mxu0 %v382
    %636 = vmatpush1.msra.mxu0 %v381
    %637 = vmatprep.subr.mxu0 %v384
    %638 = vmatpush1.msra.mxu0 %v383
    %639 = vmatprep.subr.mxu0 %v386
    %640 = vmatpush1.msra.mxu0 %v385
    %641 = vmatprep.subr.mxu0 %v388
    %642 = vmatpush1.msra.mxu0 %v387
    %643 = vmatprep.subr.mxu0 %v390
    %644 = vmatpush1.msra.mxu0 %v389
    %645 = vmatprep.subr.mxu0 %v392
    %646 = vmatpush1.msra.mxu0 %v391
    %647 = vmatprep.subr.mxu0 %v394
    %648 = vmatpush1.msra.mxu0 %v393
    %649 = vmatprep.subr.mxu0 %v396
    %650 = vmatpush1.msra.mxu0 %v395
    %651 = vmatprep.subr.mxu0 %v398
    %652 = vmatpush1.msra.mxu0 %v397
    %653 = vmatprep.subr.mxu0 %v400
    %654 = vmatpush1.msra.mxu0 %v399
    %655 = vmatprep.subr.mxu0 %v402
    %656 = vmatpush1.msra.mxu0 %v401
    %657 = vmatprep.subr.mxu0 %v404
    %658 = vmatpush1.msra.mxu0 %v403
    %659 = vmatprep.subr.mxu0 %v406
    %660 = vmatpush1.msra.mxu0 %v405
    %661 = vmatprep.subr.mxu0 %v408
    %662 = vmatpush1.msra.mxu0 %v407
    %663 = vmatprep.subr.mxu0 %v410
    %664 = vmatpush1.msra.mxu0 %v409
    %665 = vmatprep.subr.mxu0 %v412
    %666 = vmatpush1.msra.mxu0 %v411
    %667 = vmatprep.subr.mxu0 %v414
    %668 = vmatpush1.msra.mxu0 %v413
    %669 = vmatprep.subr.mxu0 %v416
    %670 = vmatpush1.msra.mxu0 %v415
    %671 = vmatprep.subr.mxu0 %v418
    %672 = vmatpush1.msra.mxu0 %v417
    %673 = vmatprep.subr.mxu0 %v420
    %674 = vmatpush1.msra.mxu0 %v419
    %675 = vmatprep.mubr.f32.mxu0 %v222
    %676 = vmatmul.mubr.f32.gmra.mrb[0].mxu0 %v221
    %v677 = vpop.f32.mrb[0].mxu0
    %v678 = vadd.f32 %v589, %v677
    %v679 = vpop.f32.mrb[0].mxu0
    %v680 = vadd.f32 %v591, %v679
    %681 = vmatprep.mubr.f32.mxu0 %v224
    %682 = vmatmul.mubr.f32.gmra.mrb[0].mxu0 %v223
    %v683 = vpop.f32.mrb[0].mxu0
    %v684 = vadd.f32 %v595, %v683
    %v685 = vpop.f32.mrb[0].mxu0
    %v686 = vadd.f32 %v597, %v685
    %687 = vmatprep.mubr.f32.mxu0 %v226
    %688 = vmatmul.mubr.f32.gmra.mrb[0].mxu0 %v225
    %v689 = vpop.f32.mrb[0].mxu0
    %v690 = vadd.f32 %v601, %v689
    %v691 = vpop.f32.mrb[0].mxu0
    %v692 = vadd.f32 %v603, %v691
    %693 = vmatprep.mubr.f32.mxu0 %v228
    %694 = vmatmul.mubr.f32.gmra.mrb[0].mxu0 %v227
    %v695 = vpop.f32.mrb[0].mxu0
    %v696 = vadd.f32 %v607, %v695
    %v697 = vpop.f32.mrb[0].mxu0
    %v698 = vadd.f32 %v609, %v697
    %699 = vdwg.mxu0
    %v700 = vmax.f32 %v678, 0.0
    %v701 = vmax.f32 %v680, 0.0
    %v702 = vmax.f32 %v684, 0.0
    %v703 = vmax.f32 %v686, 0.0
    %v704 = vmax.f32 %v690, 0.0
    %v705 = vmax.f32 %v692, 0.0
    %v706 = vmax.f32 %v696, 0.0
    %v707 = vmax.f32 %v698, 0.0
    %v716 = vrot.slane %v700, 7
    %v717 = vrot.slane %v701, 7
    %v718 = vrot.slane %v702, 7
    %v719 = vsel %vm163, %v716, %v718
    %v720 = vrot.slane %v703, 7
    %v721 = vsel %vm163, %v717, %v720
    %v722 = vrot.slane %v704, 7
    %v723 = vsel %vm163, %v718, %v722
    %v724 = vrot.slane %v705, 7
    %v725 = vsel %vm163, %v720, %v724
    %v726 = vrot.slane %v706, 7
    %v727 = vsel %vm163, %v722, %v726
    %v728 = vrot.slane %v707, 7
    %v729 = vsel %vm163, %v724, %v728
    %v738 = vsel %vm163, 0.0, %v716
    %v739 = vsel %vm163, 0.0, %v717
    %v740 = vrot.slane %v700, 1
    %v741 = vrot.slane %v702, 1
    %v742 = vsel %vm188, %v740, %v741
    %v743 = vrot.slane %v701, 1
    %v744 = vrot.slane %v703, 1
    %v745 = vsel %vm188, %v743, %v744
    %v746 = vrot.slane %v704, 1
    %v747 = vsel %vm188, %v741, %v746
    %v748 = vrot.slane %v705, 1
    %v749 = vsel %vm188, %v744, %v748
    %v750 = vrot.slane %v706, 1
    %v751 = vsel %vm188, %v746, %v750
    %v752 = vrot.slane %v707, 1
    %v753 = vsel %vm188, %v748, %v752
    %v762 = vsel %vm188, %v750, 0.0
    %v763 = vsel %vm188, %v752, 0.0
    %v764 = vsel %vm147, %v738, 0.0
    %v765 = vsel %vm147, %v739, 0.0
    %v766 = vsel %vm148, %v719, 0.0
    %v767 = vsel %vm148, %v721, 0.0
    %v768 = vsel %vm149, %v723, 0.0
    %v769 = vsel %vm149, %v725, 0.0
    %v770 = vsel %vm150, %v727, 0.0
    %v771 = vsel %vm150, %v729, 0.0
    %v772 = vsel %vm151, %v742, 0.0
    %v773 = vsel %vm151, %v745, 0.0
    %v774 = vsel %vm152, %v747, 0.0
    %v775 = vsel %vm152, %v749, 0.0
    %v776 = vsel %vm153, %v751, 0.0
    %v777 = vsel %vm153, %v753, 0.0
    %v778 = vsel %vm154, %v762, 0.0
    %v779 = vsel %vm154, %v763, 0.0
    %v780 = vld [vmem:[#allocation8] sm:$0xff]
    %v781 = vld [vmem:[#allocation8 + $0x8] sm:$0xff]
    %v782 = vld [vmem:[#allocation8 + $0x10] sm:$0xff]
    %v783 = vld [vmem:[#allocation8 + $0x18] sm:$0xff]
    %v784 = vld [vmem:[#allocation8 + $0x20] sm:$0xff]
    %v785 = vld [vmem:[#allocation8 + $0x28] sm:$0xff]
    %v786 = vld [vmem:[#allocation8 + $0x30] sm:$0xff]
    %v787 = vld [vmem:[#allocation8 + $0x38] sm:$0xff]
    %v788 = vld [vmem:[#allocation8 + $0x40] sm:$0xff]
    %v789 = vld [vmem:[#allocation8 + $0x48] sm:$0xff]
    %v790 = vld [vmem:[#allocation8 + $0x50] sm:$0xff]
    %v791 = vld [vmem:[#allocation8 + $0x58] sm:$0xff]
    %v792 = vld [vmem:[#allocation8 + $0x60] sm:$0xff]
    %v793 = vld [vmem:[#allocation8 + $0x68] sm:$0xff]
    %v794 = vld [vmem:[#allocation8 + $0x70] sm:$0xff]
    %v795 = vld [vmem:[#allocation8 + $0x78] sm:$0xff]
    %v796 = vld [vmem:[#allocation8 + $0x80] sm:$0xff]
    %v797 = vld [vmem:[#allocation8 + $0x88] sm:$0xff]
    %v798 = vld [vmem:[#allocation8 + $0x90] sm:$0xff]
    %v799 = vld [vmem:[#allocation8 + $0x98] sm:$0xff]
    %v800 = vld [vmem:[#allocation8 + $0xa0] sm:$0xff]
    %v801 = vld [vmem:[#allocation8 + $0xa8] sm:$0xff]
    %v802 = vld [vmem:[#allocation8 + $0xb0] sm:$0xff]
    %v803 = vld [vmem:[#allocation8 + $0xb8] sm:$0xff]
    %v804 = vld [vmem:[#allocation8 + $0xc0] sm:$0xff]
    %v805 = vld [vmem:[#allocation8 + $0xc8] sm:$0xff]
    %v806 = vld [vmem:[#allocation8 + $0xd0] sm:$0xff]
    %v807 = vld [vmem:[#allocation8 + $0xd8] sm:$0xff]
    %v808 = vld [vmem:[#allocation8 + $0xe0] sm:$0xff]
    %v809 = vld [vmem:[#allocation8 + $0xe8] sm:$0xff]
    %v810 = vld [vmem:[#allocation8 + $0xf0] sm:$0xff]
    %v811 = vld [vmem:[#allocation8 + $0xf8] sm:$0xff]
    %v812 = vld [vmem:[#allocation8 + $0x100] sm:$0xff]
    %v813 = vld [vmem:[#allocation8 + $0x108] sm:$0xff]
    %v814 = vld [vmem:[#allocation8 + $0x110] sm:$0xff]
    %v815 = vld [vmem:[#allocation8 + $0x118] sm:$0xff]
    %v816 = vld [vmem:[#allocation8 + $0x120] sm:$0xff]
    %v817 = vld [vmem:[#allocation8 + $0x128] sm:$0xff]
    %v818 = vld [vmem:[#allocation8 + $0x130] sm:$0xff]
    %v819 = vld [vmem:[#allocation8 + $0x138] sm:$0xff]
    %v820 = vld [vmem:[#allocation8 + $0x140] sm:$0xff]
    %v821 = vld [vmem:[#allocation8 + $0x148] sm:$0xff]
    %v822 = vld [vmem:[#allocation8 + $0x150] sm:$0xff]
    %v823 = vld [vmem:[#allocation8 + $0x158] sm:$0xff]
    %v824 = vld [vmem:[#allocation8 + $0x160] sm:$0xff]
    %v825 = vld [vmem:[#allocation8 + $0x168] sm:$0xff]
    %v826 = vld [vmem:[#allocation8 + $0x170] sm:$0xff]
    %v827 = vld [vmem:[#allocation8 + $0x178] sm:$0xff]
    %v828 = vld [vmem:[#allocation8 + $0x180] sm:$0xff]
    %v829 = vld [vmem:[#allocation8 + $0x188] sm:$0xff]
    %v830 = vld [vmem:[#allocation8 + $0x190] sm:$0xff]
    %v831 = vld [vmem:[#allocation8 + $0x198] sm:$0xff]
    %v832 = vld [vmem:[#allocation8 + $0x1a0] sm:$0xff]
    %v833 = vld [vmem:[#allocation8 + $0x1a8] sm:$0xff]
    %v834 = vld [vmem:[#allocation8 + $0x1b0] sm:$0xff]
    %v835 = vld [vmem:[#allocation8 + $0x1b8] sm:$0xff]
    %v836 = vld [vmem:[#allocation8 + $0x1c0] sm:$0xff]
    %v837 = vld [vmem:[#allocation8 + $0x1c8] sm:$0xff]
    %v838 = vld [vmem:[#allocation8 + $0x1d0] sm:$0xff]
    %v839 = vld [vmem:[#allocation8 + $0x1d8] sm:$0xff]
    %v840 = vld [vmem:[#allocation8 + $0x1e0] sm:$0xff]
    %v841 = vld [vmem:[#allocation8 + $0x1e8] sm:$0xff]
    %v842 = vld [vmem:[#allocation8 + $0x1f0] sm:$0xff]
    %v843 = vld [vmem:[#allocation8 + $0x1f8] sm:$0xff]
    %v844 = vld [vmem:[#allocation8 + $0x200] sm:$0xff]
    %v845 = vld [vmem:[#allocation8 + $0x208] sm:$0xff]
    %v846 = vld [vmem:[#allocation8 + $0x210] sm:$0xff]
    %v847 = vld [vmem:[#allocation8 + $0x218] sm:$0xff]
    %v848 = vld [vmem:[#allocation8 + $0x220] sm:$0xff]
    %v849 = vld [vmem:[#allocation8 + $0x228] sm:$0xff]
    %v850 = vld [vmem:[#allocation8 + $0x230] sm:$0xff]
    %v851 = vld [vmem:[#allocation8 + $0x238] sm:$0xff]
    %v852 = vld [vmem:[#allocation8 + $0x240] sm:$0xff]
    %v853 = vld [vmem:[#allocation8 + $0x248] sm:$0xff]
    %v854 = vld [vmem:[#allocation8 + $0x250] sm:$0xff]
    %v855 = vld [vmem:[#allocation8 + $0x258] sm:$0xff]
    %v856 = vld [vmem:[#allocation8 + $0x260] sm:$0xff]
    %v857 = vld [vmem:[#allocation8 + $0x268] sm:$0xff]
    %v858 = vld [vmem:[#allocation8 + $0x270] sm:$0xff]
    %v859 = vld [vmem:[#allocation8 + $0x278] sm:$0xff]
    %v860 = vld [vmem:[#allocation8 + $0x280] sm:$0xff]
    %v861 = vld [vmem:[#allocation8 + $0x288] sm:$0xff]
    %v862 = vld [vmem:[#allocation8 + $0x290] sm:$0xff]
    %v863 = vld [vmem:[#allocation8 + $0x298] sm:$0xff]
    %v864 = vld [vmem:[#allocation8 + $0x2a0] sm:$0xff]
    %v865 = vld [vmem:[#allocation8 + $0x2a8] sm:$0xff]
    %v866 = vld [vmem:[#allocation8 + $0x2b0] sm:$0xff]
    %v867 = vld [vmem:[#allocation8 + $0x2b8] sm:$0xff]
    %v868 = vld [vmem:[#allocation8 + $0x2c0] sm:$0xff]
    %v869 = vld [vmem:[#allocation8 + $0x2c8] sm:$0xff]
    %v870 = vld [vmem:[#allocation8 + $0x2d0] sm:$0xff]
    %v871 = vld [vmem:[#allocation8 + $0x2d8] sm:$0xff]
    %v872 = vld [vmem:[#allocation8 + $0x2e0] sm:$0xff]
    %v873 = vld [vmem:[#allocation8 + $0x2e8] sm:$0xff]
    %v874 = vld [vmem:[#allocation8 + $0x2f0] sm:$0xff]
    %v875 = vld [vmem:[#allocation8 + $0x2f8] sm:$0xff]
    %v876 = vld [vmem:[#allocation8 + $0x300] sm:$0xff]
    %v877 = vld [vmem:[#allocation8 + $0x308] sm:$0xff]
    %v878 = vld [vmem:[#allocation8 + $0x310] sm:$0xff]
    %v879 = vld [vmem:[#allocation8 + $0x318] sm:$0xff]
    %v880 = vld [vmem:[#allocation8 + $0x320] sm:$0xff]
    %v881 = vld [vmem:[#allocation8 + $0x328] sm:$0xff]
    %v882 = vld [vmem:[#allocation8 + $0x330] sm:$0xff]
    %v883 = vld [vmem:[#allocation8 + $0x338] sm:$0xff]
    %v884 = vld [vmem:[#allocation8 + $0x340] sm:$0xff]
    %v885 = vld [vmem:[#allocation8 + $0x348] sm:$0xff]
    %v886 = vld [vmem:[#allocation8 + $0x350] sm:$0xff]
    %v887 = vld [vmem:[#allocation8 + $0x358] sm:$0xff]
    %v888 = vld [vmem:[#allocation8 + $0x360] sm:$0xff]
    %v889 = vld [vmem:[#allocation8 + $0x368] sm:$0xff]
    %v890 = vld [vmem:[#allocation8 + $0x370] sm:$0xff]
    %v891 = vld [vmem:[#allocation8 + $0x378] sm:$0xff]
    %v892 = vld [vmem:[#allocation8 + $0x380] sm:$0xff]
    %v893 = vld [vmem:[#allocation8 + $0x388] sm:$0xff]
    %v894 = vld [vmem:[#allocation8 + $0x390] sm:$0xff]
    %v895 = vld [vmem:[#allocation8 + $0x398] sm:$0xff]
    %v896 = vld [vmem:[#allocation8 + $0x3a0] sm:$0xff]
    %v897 = vld [vmem:[#allocation8 + $0x3a8] sm:$0xff]
    %v898 = vld [vmem:[#allocation8 + $0x3b0] sm:$0xff]
    %v899 = vld [vmem:[#allocation8 + $0x3b8] sm:$0xff]
    %v900 = vld [vmem:[#allocation8 + $0x3c0] sm:$0xff]
    %v901 = vld [vmem:[#allocation8 + $0x3c8] sm:$0xff]
    %v902 = vld [vmem:[#allocation8 + $0x3d0] sm:$0xff]
    %v903 = vld [vmem:[#allocation8 + $0x3d8] sm:$0xff]
    %v904 = vld [vmem:[#allocation8 + $0x3e0] sm:$0xff]
    %v905 = vld [vmem:[#allocation8 + $0x3e8] sm:$0xff]
    %v906 = vld [vmem:[#allocation8 + $0x3f0] sm:$0xff]
    %v907 = vld [vmem:[#allocation8 + $0x3f8] sm:$0xff]
    %v908 = vld [vmem:[#allocation8 + $0x400] sm:$0xff]
    %v909 = vld [vmem:[#allocation8 + $0x408] sm:$0xff]
    %v910 = vld [vmem:[#allocation8 + $0x410] sm:$0xff]
    %v911 = vld [vmem:[#allocation8 + $0x418] sm:$0xff]
    %v912 = vld [vmem:[#allocation8 + $0x420] sm:$0xff]
    %v913 = vld [vmem:[#allocation8 + $0x428] sm:$0xff]
    %v914 = vld [vmem:[#allocation8 + $0x430] sm:$0xff]
    %v915 = vld [vmem:[#allocation8 + $0x438] sm:$0xff]
    %v916 = vld [vmem:[#allocation8 + $0x440] sm:$0xff]
    %v917 = vld [vmem:[#allocation8 + $0x448] sm:$0xff]
    %v918 = vld [vmem:[#allocation8 + $0x450] sm:$0xff]
    %v919 = vld [vmem:[#allocation8 + $0x458] sm:$0xff]
    %v920 = vld [vmem:[#allocation8 + $0x460] sm:$0xff]
    %v921 = vld [vmem:[#allocation8 + $0x468] sm:$0xff]
    %v922 = vld [vmem:[#allocation8 + $0x470] sm:$0xff]
    %v923 = vld [vmem:[#allocation8 + $0x478] sm:$0xff]
    %v924 = vld [vmem:[#allocation8 + $0x480] sm:$0xff]
    %v925 = vld [vmem:[#allocation8 + $0x488] sm:$0xff]
    %v926 = vld [vmem:[#allocation8 + $0x490] sm:$0xff]
    %v927 = vld [vmem:[#allocation8 + $0x498] sm:$0xff]
    %v928 = vld [vmem:[#allocation8 + $0x4a0] sm:$0xff]
    %v929 = vld [vmem:[#allocation8 + $0x4a8] sm:$0xff]
    %v930 = vld [vmem:[#allocation8 + $0x4b0] sm:$0xff]
    %v931 = vld [vmem:[#allocation8 + $0x4b8] sm:$0xff]
    %v932 = vld [vmem:[#allocation8 + $0x4c0] sm:$0xff]
    %v933 = vld [vmem:[#allocation8 + $0x4c8] sm:$0xff]
    %v934 = vld [vmem:[#allocation8 + $0x4d0] sm:$0xff]
    %v935 = vld [vmem:[#allocation8 + $0x4d8] sm:$0xff]
    %v936 = vld [vmem:[#allocation8 + $0x4e0] sm:$0xff]
    %v937 = vld [vmem:[#allocation8 + $0x4e8] sm:$0xff]
    %v938 = vld [vmem:[#allocation8 + $0x4f0] sm:$0xff]
    %v939 = vld [vmem:[#allocation8 + $0x4f8] sm:$0xff]
    %v940 = vld [vmem:[#allocation8 + $0x500] sm:$0xff]
    %v941 = vld [vmem:[#allocation8 + $0x508] sm:$0xff]
    %v942 = vld [vmem:[#allocation8 + $0x510] sm:$0xff]
    %v943 = vld [vmem:[#allocation8 + $0x518] sm:$0xff]
    %v944 = vld [vmem:[#allocation8 + $0x520] sm:$0xff]
    %v945 = vld [vmem:[#allocation8 + $0x528] sm:$0xff]
    %v946 = vld [vmem:[#allocation8 + $0x530] sm:$0xff]
    %v947 = vld [vmem:[#allocation8 + $0x538] sm:$0xff]
    %v948 = vld [vmem:[#allocation8 + $0x540] sm:$0xff]
    %v949 = vld [vmem:[#allocation8 + $0x548] sm:$0xff]
    %v950 = vld [vmem:[#allocation8 + $0x550] sm:$0xff]
    %v951 = vld [vmem:[#allocation8 + $0x558] sm:$0xff]
    %v952 = vld [vmem:[#allocation8 + $0x560] sm:$0xff]
    %v953 = vld [vmem:[#allocation8 + $0x568] sm:$0xff]
    %v954 = vld [vmem:[#allocation8 + $0x570] sm:$0xff]
    %v955 = vld [vmem:[#allocation8 + $0x578] sm:$0xff]
    %v956 = vld [vmem:[#allocation8 + $0x580] sm:$0xff]
    %v957 = vld [vmem:[#allocation8 + $0x588] sm:$0xff]
    %v958 = vld [vmem:[#allocation8 + $0x590] sm:$0xff]
    %v959 = vld [vmem:[#allocation8 + $0x598] sm:$0xff]
    %v960 = vld [vmem:[#allocation8 + $0x5a0] sm:$0xff]
    %v961 = vld [vmem:[#allocation8 + $0x5a8] sm:$0xff]
    %v962 = vld [vmem:[#allocation8 + $0x5b0] sm:$0xff]
    %v963 = vld [vmem:[#allocation8 + $0x5b8] sm:$0xff]
    %v964 = vld [vmem:[#allocation8 + $0x5c0] sm:$0xff]
    %v965 = vld [vmem:[#allocation8 + $0x5c8] sm:$0xff]
    %v966 = vld [vmem:[#allocation8 + $0x5d0] sm:$0xff]
    %v967 = vld [vmem:[#allocation8 + $0x5d8] sm:$0xff]
    %v968 = vld [vmem:[#allocation8 + $0x5e0] sm:$0xff]
    %v969 = vld [vmem:[#allocation8 + $0x5e8] sm:$0xff]
    %v970 = vld [vmem:[#allocation8 + $0x5f0] sm:$0xff]
    %v971 = vld [vmem:[#allocation8 + $0x5f8] sm:$0xff]
    %v972 = vld [vmem:[%s4] sm:$0x3]
    %v974 = vlaneseq
    %v975 = vshrl.u32 %v974, 7
    %v976 = vsub.s32 0, %v975
    %v977 = vrot.slane %v972, %v976
    %v978 = vlaneseq
    %v979 = vshrl.u32 %v978, 7
    %v980 = vsub.s32 1, %v979
    %v981 = vrot.slane %v972, %v980
    %984 = vmatprep.subr.mxu0 %v781
    %985 = vmatpush1.msra.mxu0 %v780
    %986 = vmatprep.subr.mxu0 %v783
    %987 = vmatpush1.msra.mxu0 %v782
    %988 = vmatprep.subr.mxu0 %v785
    %989 = vmatpush1.msra.mxu0 %v784
    %990 = vmatprep.subr.mxu0 %v787
    %991 = vmatpush1.msra.mxu0 %v786
    %992 = vmatprep.subr.mxu0 %v789
    %993 = vmatpush1.msra.mxu0 %v788
    %994 = vmatprep.subr.mxu0 %v791
    %995 = vmatpush1.msra.mxu0 %v790
    %996 = vmatprep.subr.mxu0 %v793
    %997 = vmatpush1.msra.mxu0 %v792
    %998 = vmatprep.subr.mxu0 %v795
    %999 = vmatpush1.msra.mxu0 %v794
    %1000 = vmatprep.subr.mxu0 %v797
    %1001 = vmatpush1.msra.mxu0 %v796
    %1002 = vmatprep.subr.mxu0 %v799
    %1003 = vmatpush1.msra.mxu0 %v798
    %1004 = vmatprep.subr.mxu0 %v801
    %1005 = vmatpush1.msra.mxu0 %v800
    %1006 = vmatprep.subr.mxu0 %v803
    %1007 = vmatpush1.msra.mxu0 %v802
    %1008 = vmatprep.subr.mxu0 %v805
    %1009 = vmatpush1.msra.mxu0 %v804
    %1010 = vmatprep.subr.mxu0 %v807
    %1011 = vmatpush1.msra.mxu0 %v806
    %1012 = vmatprep.subr.mxu0 %v809
    %1013 = vmatpush1.msra.mxu0 %v808
    %1014 = vmatprep.subr.mxu0 %v811
    %1015 = vmatpush1.msra.mxu0 %v810
    %1016 = vmatprep.subr.mxu0 %v813
    %1017 = vmatpush1.msra.mxu0 %v812
    %1018 = vmatprep.subr.mxu0 %v815
    %1019 = vmatpush1.msra.mxu0 %v814
    %1020 = vmatprep.subr.mxu0 %v817
    %1021 = vmatpush1.msra.mxu0 %v816
    %1022 = vmatprep.subr.mxu0 %v819
    %1023 = vmatpush1.msra.mxu0 %v818
    %1024 = vmatprep.subr.mxu0 %v821
    %1025 = vmatpush1.msra.mxu0 %v820
    %1026 = vmatprep.subr.mxu0 %v823
    %1027 = vmatpush1.msra.mxu0 %v822
    %1028 = vmatprep.subr.mxu0 %v825
    %1029 = vmatpush1.msra.mxu0 %v824
    %1030 = vmatprep.subr.mxu0 %v827
    %1031 = vmatpush1.msra.mxu0 %v826
    %1032 = vmatprep.subr.mxu0 %v829
    %1033 = vmatpush1.msra.mxu0 %v828
    %1034 = vmatprep.subr.mxu0 %v831
    %1035 = vmatpush1.msra.mxu0 %v830
    %1036 = vmatprep.subr.mxu0 %v833
    %1037 = vmatpush1.msra.mxu0 %v832
    %1038 = vmatprep.subr.mxu0 %v835
    %1039 = vmatpush1.msra.mxu0 %v834
    %1040 = vmatprep.subr.mxu0 %v837
    %1041 = vmatpush1.msra.mxu0 %v836
    %1042 = vmatprep.subr.mxu0 %v839
    %1043 = vmatpush1.msra.mxu0 %v838
    %1044 = vmatprep.subr.mxu0 %v841
    %1045 = vmatpush1.msra.mxu0 %v840
    %1046 = vmatprep.subr.mxu0 %v843
    %1047 = vmatpush1.msra.mxu0 %v842
    %1048 = vmatprep.mubr.f32.mxu0 %v765
    %1049 = vmatmul.mubr.f32.gmra.mrb[0].mxu0 %v764
    %v1050 = vpop.f32.mrb[0].mxu0
    %v1051 = vadd.f32 %v977, %v1050
    %v1052 = vpop.f32.mrb[0].mxu0
    %v1053 = vadd.f32 %v981, %v1052
    %1054 = vmatprep.mubr.f32.mxu0 %v767
    %1055 = vmatmul.mubr.f32.gmra.mrb[0].mxu0 %v766
    %v1056 = vpop.f32.mrb[0].mxu0
    %v1057 = vadd.f32 %v977, %v1056
    %v1058 = vpop.f32.mrb[0].mxu0
    %v1059 = vadd.f32 %v981, %v1058
    %1060 = vmatprep.mubr.f32.mxu0 %v769
    %1061 = vmatmul.mubr.f32.gmra.mrb[0].mxu0 %v768
    %v1062 = vpop.f32.mrb[0].mxu0
    %v1063 = vadd.f32 %v977, %v1062
    %v1064 = vpop.f32.mrb[0].mxu0
    %v1065 = vadd.f32 %v981, %v1064
    %1066 = vmatprep.mubr.f32.mxu0 %v771
    %1067 = vmatmul.mubr.f32.gmra.mrb[0].mxu0 %v770
    %v1068 = vpop.f32.mrb[0].mxu0
    %v1069 = vadd.f32 %v977, %v1068
    %v1070 = vpop.f32.mrb[0].mxu0
    %v1071 = vadd.f32 %v981, %v1070
    %1072 = vdwg.mxu0
    %1073 = vmatprep.subr.mxu0 %v845
    %1074 = vmatpush1.msra.mxu0 %v844
    %1075 = vmatprep.subr.mxu0 %v847
    %1076 = vmatpush1.msra.mxu0 %v846
    %1077 = vmatprep.subr.mxu0 %v849
    %1078 = vmatpush1.msra.mxu0 %v848
    %1079 = vmatprep.subr.mxu0 %v851
    %1080 = vmatpush1.msra.mxu0 %v850
    %1081 = vmatprep.subr.mxu0 %v853
    %1082 = vmatpush1.msra.mxu0 %v852
    %1083 = vmatprep.subr.mxu0 %v855
    %1084 = vmatpush1.msra.mxu0 %v854
    %1085 = vmatprep.subr.mxu0 %v857
    %1086 = vmatpush1.msra.mxu0 %v856
    %1087 = vmatprep.subr.mxu0 %v859
    %1088 = vmatpush1.msra.mxu0 %v858
    %1089 = vmatprep.subr.mxu0 %v861
    %1090 = vmatpush1.msra.mxu0 %v860
    %1091 = vmatprep.subr.mxu0 %v863
    %1092 = vmatpush1.msra.mxu0 %v862
    %1093 = vmatprep.subr.mxu0 %v865
    %1094 = vmatpush1.msra.mxu0 %v864
    %1095 = vmatprep.subr.mxu0 %v867
    %1096 = vmatpush1.msra.mxu0 %v866
    %1097 = vmatprep.subr.mxu0 %v869
    %1098 = vmatpush1.msra.mxu0 %v868
    %1099 = vmatprep.subr.mxu0 %v871
    %1100 = vmatpush1.msra.mxu0 %v870
    %1101 = vmatprep.subr.mxu0 %v873
    %1102 = vmatpush1.msra.mxu0 %v872
    %1103 = vmatprep.subr.mxu0 %v875
    %1104 = vmatpush1.msra.mxu0 %v874
    %1105 = vmatprep.subr.mxu0 %v877
    %1106 = vmatpush1.msra.mxu0 %v876
    %1107 = vmatprep.subr.mxu0 %v879
    %1108 = vmatpush1.msra.mxu0 %v878
    %1109 = vmatprep.subr.mxu0 %v881
    %1110 = vmatpush1.msra.mxu0 %v880
    %1111 = vmatprep.subr.mxu0 %v883
    %1112 = vmatpush1.msra.mxu0 %v882
    %1113 = vmatprep.subr.mxu0 %v885
    %1114 = vmatpush1.msra.mxu0 %v884
    %1115 = vmatprep.subr.mxu0 %v887
    %1116 = vmatpush1.msra.mxu0 %v886
    %1117 = vmatprep.subr.mxu0 %v889
    %1118 = vmatpush1.msra.mxu0 %v888
    %1119 = vmatprep.subr.mxu0 %v891
    %1120 = vmatpush1.msra.mxu0 %v890
    %1121 = vmatprep.subr.mxu0 %v893
    %1122 = vmatpush1.msra.mxu0 %v892
    %1123 = vmatprep.subr.mxu0 %v895
    %1124 = vmatpush1.msra.mxu0 %v894
    %1125 = vmatprep.subr.mxu0 %v897
    %1126 = vmatpush1.msra.mxu0 %v896
    %1127 = vmatprep.subr.mxu0 %v899
    %1128 = vmatpush1.msra.mxu0 %v898
    %1129 = vmatprep.subr.mxu0 %v901
    %1130 = vmatpush1.msra.mxu0 %v900
    %1131 = vmatprep.subr.mxu0 %v903
    %1132 = vmatpush1.msra.mxu0 %v902
    %1133 = vmatprep.subr.mxu0 %v905
    %1134 = vmatpush1.msra.mxu0 %v904
    %1135 = vmatprep.subr.mxu0 %v907
    %1136 = vmatpush1.msra.mxu0 %v906
    %1137 = vmatprep.mubr.f32.mxu0 %v701
    %1138 = vmatmul.mubr.f32.gmra.mrb[0].mxu0 %v700
    %v1139 = vpop.f32.mrb[0].mxu0
    %v1140 = vadd.f32 %v1051, %v1139
    %v1141 = vpop.f32.mrb[0].mxu0
    %v1142 = vadd.f32 %v1053, %v1141
    %1143 = vmatprep.mubr.f32.mxu0 %v703
    %1144 = vmatmul.mubr.f32.gmra.mrb[0].mxu0 %v702
    %v1145 = vpop.f32.mrb[0].mxu0
    %v1146 = vadd.f32 %v1057, %v1145
    %v1147 = vpop.f32.mrb[0].mxu0
    %v1148 = vadd.f32 %v1059, %v1147
    %1149 = vmatprep.mubr.f32.mxu0 %v705
    %1150 = vmatmul.mubr.f32.gmra.mrb[0].mxu0 %v704
    %v1151 = vpop.f32.mrb[0].mxu0
    %v1152 = vadd.f32 %v1063, %v1151
    %v1153 = vpop.f32.mrb[0].mxu0
    %v1154 = vadd.f32 %v1065, %v1153
    %1155 = vmatprep.mubr.f32.mxu0 %v707
    %1156 = vmatmul.mubr.f32.gmra.mrb[0].mxu0 %v706
    %v1157 = vpop.f32.mrb[0].mxu0
    %v1158 = vadd.f32 %v1069, %v1157
    %v1159 = vpop.f32.mrb[0].mxu0
    %v1160 = vadd.f32 %v1071, %v1159
    %1161 = vdwg.mxu0
    %1162 = vmatprep.subr.mxu0 %v909
    %1163 = vmatpush1.msra.mxu0 %v908
    %1164 = vmatprep.subr.mxu0 %v911
    %1165 = vmatpush1.msra.mxu0 %v910
    %1166 = vmatprep.subr.mxu0 %v913
    %1167 = vmatpush1.msra.mxu0 %v912
    %1168 = vmatprep.subr.mxu0 %v915
    %1169 = vmatpush1.msra.mxu0 %v914
    %1170 = vmatprep.subr.mxu0 %v917
    %1171 = vmatpush1.msra.mxu0 %v916
    %1172 = vmatprep.subr.mxu0 %v919
    %1173 = vmatpush1.msra.mxu0 %v918
    %1174 = vmatprep.subr.mxu0 %v921
    %1175 = vmatpush1.msra.mxu0 %v920
    %1176 = vmatprep.subr.mxu0 %v923
    %1177 = vmatpush1.msra.mxu0 %v922
    %1178 = vmatprep.subr.mxu0 %v925
    %1179 = vmatpush1.msra.mxu0 %v924
    %1180 = vmatprep.subr.mxu0 %v927
    %1181 = vmatpush1.msra.mxu0 %v926
    %1182 = vmatprep.subr.mxu0 %v929
    %1183 = vmatpush1.msra.mxu0 %v928
    %1184 = vmatprep.subr.mxu0 %v931
    %1185 = vmatpush1.msra.mxu0 %v930
    %1186 = vmatprep.subr.mxu0 %v933
    %1187 = vmatpush1.msra.mxu0 %v932
    %1188 = vmatprep.subr.mxu0 %v935
    %1189 = vmatpush1.msra.mxu0 %v934
    %1190 = vmatprep.subr.mxu0 %v937
    %1191 = vmatpush1.msra.mxu0 %v936
    %1192 = vmatprep.subr.mxu0 %v939
    %1193 = vmatpush1.msra.mxu0 %v938
    %1194 = vmatprep.subr.mxu0 %v941
    %1195 = vmatpush1.msra.mxu0 %v940
    %1196 = vmatprep.subr.mxu0 %v943
    %1197 = vmatpush1.msra.mxu0 %v942
    %1198 = vmatprep.subr.mxu0 %v945
    %1199 = vmatpush1.msra.mxu0 %v944
    %1200 = vmatprep.subr.mxu0 %v947
    %1201 = vmatpush1.msra.mxu0 %v946
    %1202 = vmatprep.subr.mxu0 %v949
    %1203 = vmatpush1.msra.mxu0 %v948
    %1204 = vmatprep.subr.mxu0 %v951
    %1205 = vmatpush1.msra.mxu0 %v950
    %1206 = vmatprep.subr.mxu0 %v953
    %1207 = vmatpush1.msra.mxu0 %v952
    %1208 = vmatprep.subr.mxu0 %v955
    %1209 = vmatpush1.msra.mxu0 %v954
    %1210 = vmatprep.subr.mxu0 %v957
    %1211 = vmatpush1.msra.mxu0 %v956
    %1212 = vmatprep.subr.mxu0 %v959
    %1213 = vmatpush1.msra.mxu0 %v958
    %1214 = vmatprep.subr.mxu0 %v961
    %1215 = vmatpush1.msra.mxu0 %v960
    %1216 = vmatprep.subr.mxu0 %v963
    %1217 = vmatpush1.msra.mxu0 %v962
    %1218 = vmatprep.subr.mxu0 %v965
    %1219 = vmatpush1.msra.mxu0 %v964
    %1220 = vmatprep.subr.mxu0 %v967
    %1221 = vmatpush1.msra.mxu0 %v966
    %1222 = vmatprep.subr.mxu0 %v969
    %1223 = vmatpush1.msra.mxu0 %v968
    %1224 = vmatprep.subr.mxu0 %v971
    %1225 = vmatpush1.msra.mxu0 %v970
    %1226 = vmatprep.mubr.f32.mxu0 %v773
    %1227 = vmatmul.mubr.f32.gmra.mrb[0].mxu0 %v772
    %v1228 = vpop.f32.mrb[0].mxu0
    %v1229 = vadd.f32 %v1140, %v1228
    %v1230 = vpop.f32.mrb[0].mxu0
    %v1231 = vadd.f32 %v1142, %v1230
    %1232 = vmatprep.mubr.f32.mxu0 %v775
    %1233 = vmatmul.mubr.f32.gmra.mrb[0].mxu0 %v774
    %v1234 = vpop.f32.mrb[0].mxu0
    %v1235 = vadd.f32 %v1146, %v1234
    %v1236 = vpop.f32.mrb[0].mxu0
    %v1237 = vadd.f32 %v1148, %v1236
    %1238 = vmatprep.mubr.f32.mxu0 %v777
    %1239 = vmatmul.mubr.f32.gmra.mrb[0].mxu0 %v776
    %v1240 = vpop.f32.mrb[0].mxu0
    %v1241 = vadd.f32 %v1152, %v1240
    %v1242 = vpop.f32.mrb[0].mxu0
    %v1243 = vadd.f32 %v1154, %v1242
    %1244 = vmatprep.mubr.f32.mxu0 %v779
    %1245 = vmatmul.mubr.f32.gmra.mrb[0].mxu0 %v778
    %v1246 = vpop.f32.mrb[0].mxu0
    %v1247 = vadd.f32 %v1158, %v1246
    %v1248 = vpop.f32.mrb[0].mxu0
    %v1249 = vadd.f32 %v1160, %v1248
    %1250 = vdwg.mxu0
    %v1251 = vadd.f32 %v1229, %v1235
    %v1252 = vrot.slane %v1251, 4
    %v1253 = vadd.f32 %v1251, %v1252
    %v1254 = vrot.slane %v1253, 2
    %v1255 = vadd.f32 %v1253, %v1254
    %v1256 = vrot.slane %v1255, 1
    %v1257 = vadd.f32 %v1255, %v1256
    %v1258 = vadd.f32 %v1231, %v1237
    %v1259 = vrot.slane %v1258, 4
    %v1260 = vadd.f32 %v1258, %v1259
    %v1261 = vrot.slane %v1260, 2
    %v1262 = vadd.f32 %v1260, %v1261
    %v1263 = vrot.slane %v1262, 1
    %v1264 = vadd.f32 %v1262, %v1263
    %1265 = vrot.lane.b32.xlu0 %v1257, 16
    %v1266 = vpop.permute.xlu0 %1265
    %1267 = vrot.lane.b32.xlu0 %v1264, 16
    %v1268 = vpop.permute.xlu0 %1267
    %v1269 = vlaneseq
    %v1270 = vand.u32 %v1269, 127
    %vm1271 = vcmp.lt.s32.totalorder %v1270, 16
    %v1272 = vsel %vm1271, %v1266, %v1268
    %v1273 = vsel %vm1271, %v1268, %v1266
    %v1274 = vadd.f32 %v1257, %v1273
    %v1275 = vadd.f32 %v1264, %v1272
    %1276 = vrot.lane.b32.xlu0 %v1274, 32
    %v1277 = vpop.permute.xlu0 %1276
    %1278 = vrot.lane.b32.xlu0 %v1275, 32
    %v1279 = vpop.permute.xlu0 %1278
    %vm1280 = vcmp.lt.s32.totalorder %v1270, 32
    %v1281 = vsel %vm1280, %v1277, %v1279
    %v1282 = vsel %vm1280, %v1279, %v1277
    %v1283 = vadd.f32 %v1274, %v1282
    %v1284 = vadd.f32 %v1275, %v1281
    %1285 = vrot.lane.b32.xlu0 %v1283, 64
    %v1286 = vpop.permute.xlu0 %1285
    %1287 = vrot.lane.b32.xlu0 %v1284, 64
    %v1288 = vpop.permute.xlu0 %1287
    %vm1289 = vcmp.lt.s32.totalorder %v1270, 64
    %v1290 = vsel %vm1289, %v1286, %v1288
    %v1291 = vsel %vm1289, %v1288, %v1286
    %v1292 = vadd.f32 %v1283, %v1291
    %v1293 = vadd.f32 %v1284, %v1290
    %v1294 = vadd.f32 %v1292, %v1293
    %v1295 = vld [vmem:[%s5] sm:$0xff]
    %v1296 = vlaneseq
    %v1297 = vshrl.u32 %v1296, 7
    %v1298 = vsub.s32 0, %v1297
    %v1299 = vrot.slane %v1294, %v1298
    %v1301 = vcombine.high %v1295, %v1295
    %v1303 = vmul.f32 %v1299, %v1295
    %v1304 = vmul.f32 %v1299, %v1301
    %vm1305 = vcmask 1043456
    %v1306 = vsel %vm1305, %v1303, 0.0
    %v1307 = vsel %vm1305, %v1304, 0.0
    %v1308 = vadd.f32 %v1306, %v1307
    %1309 = vadd.xlane.f32.xlu0 %v1308
    %v1310 = vpop.xlane.xlu0 %1309
    %v1311 = vld [vmem:[%s6] sm:$0xf]
    %v1312 = vadd.f32 %v1310, %v1311
    %v1313 = vmax.f32 %v1312, 0.0
    %v1314 = vld [vmem:[%s7] sm:$0xff]
    %1316 = vset.pattern.permute.xlu0 0
    %1317 = vperm.xlu0 %1316, %v1313
    %v1318 = vpop.permute.xlu0 %1317
    %v1321 = vcombine.high %v1314, %v1314
    %v1323 = vmul.f32 %v1318, %v1314
    %v1324 = vmul.f32 %v1318, %v1321
    %v1325 = vsel %vm1305, %v1323, 0.0
    %v1326 = vrot.slane %v1325, 4
    %v1327 = vadd.f32 %v1325, %v1326
    %v1328 = vrot.slane %v1327, 2
    %v1329 = vadd.f32 %v1327, %v1328
    %v1330 = vrot.slane %v1329, 1
    %v1331 = vadd.f32 %v1329, %v1330
    %v1332 = vsel %vm1305, %v1324, 0.0
    %v1333 = vrot.slane %v1332, 4
    %v1334 = vadd.f32 %v1332, %v1333
    %v1335 = vrot.slane %v1334, 2
    %v1336 = vadd.f32 %v1334, %v1335
    %v1337 = vrot.slane %v1336, 1
    %v1338 = vadd.f32 %v1336, %v1337
    %v1339 = vld [vmem:[%s8] sm:$0x3]
    %v1341 = vlaneseq
    %v1342 = vshrl.u32 %v1341, 7
    %v1343 = vsub.s32 0, %v1342
    %v1344 = vrot.slane %v1339, %v1343
    %v1345 = vlaneseq
    %v1346 = vshrl.u32 %v1345, 7
    %v1347 = vsub.s32 1, %v1346
    %v1348 = vrot.slane %v1339, %v1347
    %v1351 = vadd.f32 %v1331, %v1344
    %v1352 = vadd.f32 %v1338, %v1348
    %v1353 = vxor.u32 %v1351, 2147483648
    %v1354 = vxor.u32 %v1352, 2147483648
    %v1355 = vmul.f32 %v1353, 1.442695
    %v1356 = vpow.pop %v1355
    %v1357 = vmul.f32 %v1354, 1.442695
    %v1358 = vpow.pop %v1357
    %v1359 = vadd.f32 %v1356, 1.0
    %v1360 = vadd.f32 %v1358, 1.0
    %v1361 = vrcp.pop %v1359
    %v1362 = vmul.f32 1.0, %v1361
    %v1363 = vrcp.pop %v1360
    %v1364 = vmul.f32 1.0, %v1363
    %v1365 = vlaneseq
    %v1366 = vshrl.u32 %v1365, 7
    %v1367 = vsub.s32 0, %v1366
    %v1368 = vrot.slane %v1362, %v1367
    %v1369 = vlaneseq
    %v1370 = vshrl.u32 %v1369, 7
    %v1371 = vsub.s32 0, %v1370
    %v1372 = vrot.slane %v1364, %v1371
    %v1373 = vmul.f32 %v1229, %v1368
    %v1374 = vmul.f32 %v1231, %v1372
    %v1375 = vmul.f32 %v1235, %v1368
    %v1376 = vmul.f32 %v1237, %v1372
    %v1377 = vadd.f32 %v1373, %v86
    %v1378 = vadd.f32 %v1374, %v87
    %v1379 = vadd.f32 %v1375, %v88
    %v1380 = vadd.f32 %v1376, %v89
    %1381 = vst [vmem:[#allocation10] sm:$0xff] %v1377
    %1382 = vst [vmem:[#allocation10 + $0x8] sm:$0xff] %v1378
    %1383 = vst [vmem:[#allocation10 + $0x10] sm:$0xff] %v1379
    %1384 = vst [vmem:[#allocation10 + $0x18] sm:$0xff] %v1380
    %v1385 = vadd.f32 %v1241, %v1247
    %v1386 = vrot.slane %v1385, 4
    %v1387 = vadd.f32 %v1385, %v1386
    %v1388 = vrot.slane %v1387, 2
    %v1389 = vadd.f32 %v1387, %v1388
    %v1390 = vrot.slane %v1389, 1
    %v1391 = vadd.f32 %v1389, %v1390
    %v1392 = vadd.f32 %v1243, %v1249
    %v1393 = vrot.slane %v1392, 4
    %v1394 = vadd.f32 %v1392, %v1393
    %v1395 = vrot.slane %v1394, 2
    %v1396 = vadd.f32 %v1394, %v1395
    %v1397 = vrot.slane %v1396, 1
    %v1398 = vadd.f32 %v1396, %v1397
    %1399 = vrot.lane.b32.xlu0 %v1391, 16
    %v1400 = vpop.permute.xlu0 %1399
    %1401 = vrot.lane.b32.xlu0 %v1398, 16
    %v1402 = vpop.permute.xlu0 %1401
    %v1403 = vsel %vm1271, %v1400, %v1402
    %v1404 = vsel %vm1271, %v1402, %v1400
    %v1405 = vadd.f32 %v1391, %v1404
    %v1406 = vadd.f32 %v1398, %v1403
    %1407 = vrot.lane.b32.xlu0 %v1405, 32
    %v1408 = vpop.permute.xlu0 %1407
    %1409 = vrot.lane.b32.xlu0 %v1406, 32
    %v1410 = vpop.permute.xlu0 %1409
    %v1411 = vsel %vm1280, %v1408, %v1410
    %v1412 = vsel %vm1280, %v1410, %v1408
    %v1413 = vadd.f32 %v1405, %v1412
    %v1414 = vadd.f32 %v1406, %v1411
    %1415 = vrot.lane.b32.xlu0 %v1413, 64
    %v1416 = vpop.permute.xlu0 %1415
    %1417 = vrot.lane.b32.xlu0 %v1414, 64
    %v1418 = vpop.permute.xlu0 %1417
    %v1419 = vsel %vm1289, %v1416, %v1418
    %v1420 = vsel %vm1289, %v1418, %v1416
    %v1421 = vadd.f32 %v1413, %v1420
    %v1422 = vadd.f32 %v1414, %v1419
    %v1423 = vadd.f32 %v1421, %v1422
    %v1424 = vld [vmem:[%s5] sm:$0xff]
    %v1425 = vlaneseq
    %v1426 = vshrl.u32 %v1425, 7
    %v1427 = vsub.s32 0, %v1426
    %v1428 = vrot.slane %v1423, %v1427
    %v1430 = vcombine.high %v1424, %v1424
    %v1432 = vmul.f32 %v1428, %v1424
    %v1433 = vmul.f32 %v1428, %v1430
    %v1434 = vsel %vm1305, %v1432, 0.0
    %v1435 = vsel %vm1305, %v1433, 0.0
    %v1436 = vadd.f32 %v1434, %v1435
    %1437 = vadd.xlane.f32.xlu0 %v1436
    %v1438 = vpop.xlane.xlu0 %1437
    %v1439 = vld [vmem:[%s6] sm:$0xf]
    %v1440 = vadd.f32 %v1438, %v1439
    %v1441 = vmax.f32 %v1440, 0.0
    %v1442 = vld [vmem:[%s7] sm:$0xff]
    %1444 = vset.pattern.permute.xlu0 0
    %1445 = vperm.xlu0 %1444, %v1441
    %v1446 = vpop.permute.xlu0 %1445
    %v1449 = vcombine.high %v1442, %v1442
    %v1451 = vmul.f32 %v1446, %v1442
    %v1452 = vmul.f32 %v1446, %v1449
    %v1453 = vsel %vm1305, %v1451, 0.0
    %v1454 = vrot.slane %v1453, 4
    %v1455 = vadd.f32 %v1453, %v1454
    %v1456 = vrot.slane %v1455, 2
    %v1457 = vadd.f32 %v1455, %v1456
    %v1458 = vrot.slane %v1457, 1
    %v1459 = vadd.f32 %v1457, %v1458
    %v1460 = vsel %vm1305, %v1452, 0.0
    %v1461 = vrot.slane %v1460, 4
    %v1462 = vadd.f32 %v1460, %v1461
    %v1463 = vrot.slane %v1462, 2
    %v1464 = vadd.f32 %v1462, %v1463
    %v1465 = vrot.slane %v1464, 1
    %v1466 = vadd.f32 %v1464, %v1465
    %v1467 = vld [vmem:[%s8] sm:$0x3]
    %v1469 = vlaneseq
    %v1470 = vshrl.u32 %v1469, 7
    %v1471 = vsub.s32 0, %v1470
    %v1472 = vrot.slane %v1467, %v1471
    %v1473 = vlaneseq
    %v1474 = vshrl.u32 %v1473, 7
    %v1475 = vsub.s32 1, %v1474
    %v1476 = vrot.slane %v1467, %v1475
    %v1479 = vadd.f32 %v1459, %v1472
    %v1480 = vadd.f32 %v1466, %v1476
    %v1481 = vxor.u32 %v1479, 2147483648
    %v1482 = vxor.u32 %v1480, 2147483648
    %v1483 = vmul.f32 %v1481, 1.442695
    %v1484 = vpow.pop %v1483
    %v1485 = vmul.f32 %v1482, 1.442695
    %v1486 = vpow.pop %v1485
    %v1487 = vadd.f32 %v1484, 1.0
    %v1488 = vadd.f32 %v1486, 1.0
    %v1489 = vrcp.pop %v1487
    %v1490 = vmul.f32 1.0, %v1489
    %v1491 = vrcp.pop %v1488
    %v1492 = vmul.f32 1.0, %v1491
    %v1493 = vlaneseq
    %v1494 = vshrl.u32 %v1493, 7
    %v1495 = vsub.s32 0, %v1494
    %v1496 = vrot.slane %v1490, %v1495
    %v1497 = vlaneseq
    %v1498 = vshrl.u32 %v1497, 7
    %v1499 = vsub.s32 0, %v1498
    %v1500 = vrot.slane %v1492, %v1499
    %v1501 = vmul.f32 %v1241, %v1496
    %v1502 = vmul.f32 %v1243, %v1500
    %v1503 = vmul.f32 %v1247, %v1496
    %v1504 = vmul.f32 %v1249, %v1500
    %v1505 = vadd.f32 %v1501, %v90
    %v1506 = vadd.f32 %v1502, %v91
    %v1507 = vadd.f32 %v1503, %v92
    %v1508 = vadd.f32 %v1504, %v93
    %1509 = vst [vmem:[#allocation10 + $0x20] sm:$0xff] %v1505
    %1510 = vst [vmem:[#allocation10 + $0x28] sm:$0xff] %v1506
    %1511 = vst [vmem:[#allocation10 + $0x30] sm:$0xff] %v1507
    %1512 = vst [vmem:[#allocation10 + $0x38] sm:$0xff] %v1508
    // Predicated region
    $region54: #{_rcab_packed_call.1} parent=1 // pred_check
      _
    $region55: #{_rcab_packed_call.1} parent=1 // pred_check_branch
      %1514 = sbr.rel (0) target = $region57
    $region56: #{_rcab_packed_call.1} parent=1 // pred_region
      %s1516 = ssub.s32 1024, 1024
      %1517 = vsyncadd [#allocation4], %s1516
      %s1518 = sshll.u32 [#allocation10], 4
      %s1519 = int_to_ptr.vmem [resolvable:$true] %s1518
      %1524 = dma.vmem_to_hbm [thread:$0]  %s1519, 1024, %s9, [#allocation4], 256, 256, 16
    $region57: #{_rcab_packed_call.1} parent=1 // pred_fallthru
      _
    // Predicated region
    $region58: #{_rcab_packed_call.1} parent=1 // pred_check
      _
    $region59: #{_rcab_packed_call.1} parent=1 // pred_check_branch
      %1526 = sbr.rel (0) target = $region61
    $region60: #{_rcab_packed_call.1} parent=1 // pred_region
      %1527 = dma.done [#allocation4], 1024
    $region61: #{_rcab_packed_call.1} parent=1 // pred_fallthru
      _
    %1528 = vsyncpa [#allocation3], 1
    %1529 = vsyncpa [#allocation6], 1
    %1530 = vsyncpa [#allocation9], 1
    %1531 = vsyncpa [#allocation4], 1

</llo_original>
